<compile_context>
chip_gen: v7x
topology: tpu7x:2x2x1
jax: 0.10.0
libtpu: 0.0.40
codegen_flags: <defaults>
</compile_context>

<pallas_src>
import functools

import numpy as np

import jax
import jax.numpy as jnp
from jax.experimental import pallas as pl
from jax.experimental.pallas import tpu as pltpu


# ----------------------------------------------------------------------------
# Host-side precompute: 'SAME' boundary masks for the 9 taps, shape (9, H*W)
# ----------------------------------------------------------------------------
def _same_pad_masks(H, W):
    r = np.arange(H * W)
    h, w = r // W, r % W
    m = []
    for dh in (-1, 0, 1):
        for dw in (-1, 0, 1):
            m.append((h + dh >= 0) & (h + dh < H) & (w + dw >= 0) & (w + dw < W))
    return jnp.asarray(np.stack(m).astype(np.float32))          # (9, H*W)


# ----------------------------------------------------------------------------
# Fused forward kernel: flow conv -> (folded cat) stage1 -> stage2 -> avg pool
# Activations are (C, H*W): channels on sublanes, flattened spatial on lanes.
# ----------------------------------------------------------------------------
def _fused_forward_kernel(x_ref, mask_ref, wf_ref, tf_ref, w1_ref, s1_ref,
                          t1_ref, w2_ref, s2_ref, t2_ref, o_ref, *, W, HW):
    x = x_ref[0]                                                 # (C_in, HW) f32
    mask = mask_ref[...]                                         # (9, HW) f32

    def conv3x3(a, w_packed_ref):
        # a: (Cin, HW) f32; w_packed_ref: (Cout, 9*Cin) bf16 -> (Cout, HW) f32.
        # Tap t (dh, dw): shifted[:, r] = a[:, r + off] via a lane rotate
        # (pltpu.roll), rows whose source pixel is outside the image are zeroed
        # by the precomputed mask (exact 'SAME' zero padding).  The 9 masked
        # taps are stacked along K and contracted in a single MXU matmul.
        taps = []
        for t in range(9):
            dh, dw = t // 3 - 1, t % 3 - 1
            off = dh * W + dw
            sh = (-off) % HW
            shifted = a if sh == 0 else pltpu.roll(a, sh, 1)
            taps.append(shifted * mask[t:t + 1, :])
        tap_mat = jnp.concatenate(taps, axis=0).astype(jnp.bfloat16)  # (9*Cin, HW)
        return jnp.dot(w_packed_ref[...], tap_mat,
                       preferred_element_type=jnp.float32)            # (Cout, HW)

    # flow_extractor: conv3x3 + bias (no activation on the raw flow field)
    flow = conv3x3(x, wf_ref) + tf_ref[...]                      # (C_flow, HW)

    # torch.cat([flow]*5, dim=1) + bn_inception stage 1: the concat is folded
    # into w1 (exact: the 5 copies are identical); conv bias folded into t1.
    h = conv3x3(flow, w1_ref)
    h = jnp.maximum(h * s1_ref[...] + t1_ref[...], 0.0)          # (C1, HW) f32

    # bn_inception stage 2: conv + folded BN + ReLU
    h = conv3x3(h, w2_ref)
    h = jnp.maximum(h * s2_ref[...] + t2_ref[...], 0.0)          # (C2, HW) f32

    # AdaptiveAvgPool2d(1): mean over the HW lanes -> (C2, 1), no relayout
    o_ref[0] = jnp.sum(h, axis=1, keepdims=True) * (1.0 / HW)


def combined_flow_forward(x_nchw, params):
    N, C_in, H, W = x_nchw.shape
    HW = H * W
    C2 = params["w2"].shape[0]
    # NCHW -> (N, C, H*W): pure reshape, no HBM transpose.
    x = x_nchw.reshape(N, C_in, HW).astype(jnp.float32)
    mask = _same_pad_masks(H, W)                                 # (9, HW) constant

    kernel = functools.partial(_fused_forward_kernel, W=W, HW=HW)
    pooled = pl.pallas_call(
        kernel,
        out_shape=jax.ShapeDtypeStruct((N, C2, 1), jnp.float32),
        grid_spec=pltpu.PrefetchScalarGridSpec(
            num_scalar_prefetch=0,
            grid=(N,),   # N>=2 steps -> both v7x TensorCores get work
            in_specs=[
                pl.BlockSpec((1, C_in, HW), lambda n: (n, 0, 0)),      # activation
                pl.BlockSpec(mask.shape, lambda n: (0, 0)),            # SAME masks
                pl.BlockSpec(params["w_flow"].shape, lambda n: (0, 0)),
                pl.BlockSpec(params["t_flow"].shape, lambda n: (0, 0)),
                pl.BlockSpec(params["w1"].shape, lambda n: (0, 0)),
                pl.BlockSpec(params["s1"].shape, lambda n: (0, 0)),
                pl.BlockSpec(params["t1"].shape, lambda n: (0, 0)),
                pl.BlockSpec(params["w2"].shape, lambda n: (0, 0)),
                pl.BlockSpec(params["s2"].shape, lambda n: (0, 0)),
                pl.BlockSpec(params["t2"].shape, lambda n: (0, 0)),
            ],
            out_specs=pl.BlockSpec((1, C2, 1), lambda n: (n, 0, 0)),
        ),
        compiler_params=pltpu.CompilerParams(
            dimension_semantics=("parallel",),
        ),
    )(x, mask, params["w_flow"], params["t_flow"], params["w1"], params["s1"],
      params["t1"], params["w2"], params["s2"], params["t2"])

    # PyTorch output convention: [N, C, 1, 1]
    return pooled.reshape(N, C2, 1, 1)


# ----------------------------------------------------------------------------
# Parameters: raw (PyTorch-like) init and fold/prep for the fused kernel
# ----------------------------------------------------------------------------
def _bn_fold(gamma, beta, mean, var, eps=1e-5):
    scale = gamma / jnp.sqrt(var + eps)
    shift = beta - mean * scale
    return scale, shift


def init_raw_params(key):
    C_IN, C_FLOW = 6, 2          # 2 stacked RGB frames -> 2-ch flow
    C_CAT = 5 * C_FLOW           # after torch.cat([x]*5, dim=1)
    C1, C2 = 32, 64              # bn_inception stand-in widths
    ks = jax.random.split(key, 12)

    def conv_w(k, cin, cout):    # rows ordered (kh, kw, cin) -- im2col row order
        return jax.random.normal(k, (9 * cin, cout), jnp.float32) * (1.0 / (3.0 * cin ** 0.5))

    p = {}
    p["w_flow"] = conv_w(ks[0], C_IN, C_FLOW)
    p["b_flow"] = jax.random.normal(ks[1], (C_FLOW,), jnp.float32) * 0.01
    p["w1"] = conv_w(ks[2], C_CAT, C1)
    p["b1"] = jax.random.normal(ks[3], (C1,), jnp.float32) * 0.01
    p["g1"] = 1.0 + 0.1 * jax.random.normal(ks[4], (C1,), jnp.float32)
    p["be1"] = 0.1 * jax.random.normal(ks[5], (C1,), jnp.float32)
    p["m1"] = 0.1 * jax.random.normal(ks[6], (C1,), jnp.float32)
    p["v1"] = jax.random.uniform(ks[7], (C1,), jnp.float32, minval=0.5, maxval=1.5)
    p["w2"] = conv_w(ks[8], C1, C2)
    p["b2"] = jax.random.normal(ks[9], (C2,), jnp.float32) * 0.01
    p["g2"] = 1.0 + 0.1 * jax.random.normal(ks[10], (C2,), jnp.float32)
    p["be2"] = 0.1 * jax.random.normal(ks[11], (C2,), jnp.float32)
    p["m2"] = jnp.zeros((C2,), jnp.float32)
    p["v2"] = jnp.ones((C2,), jnp.float32)
    return p


def prepare_params(raw):
    C_IN, C_FLOW, C1, C2 = 6, 2, 32, 64
    s1, t1 = _bn_fold(raw["g1"], raw["be1"], raw["m1"], raw["v1"])
    s2, t2 = _bn_fold(raw["g2"], raw["be2"], raw["m2"], raw["v2"])
    # Fold torch.cat([flow]*5, dim=1) into w1: conv(cat, w1) == conv(flow, sum
    # of the 5 replicated (kh,kw,2)-blocks).  Exact ONLY because the 5 copies
    # are identical (would be wrong for a real multi-stream concat).
    w1_folded = (raw["w1"].reshape(9, 5, C_FLOW, C1).sum(axis=1)
                 .reshape(9 * C_FLOW, C1))                              # (18, C1)
    return {
        # conv weights packed to (Cout, 9*Cin), column = tap*Cin + cin, bf16 on host
        "w_flow": raw["w_flow"].T.astype(jnp.bfloat16),                 # (2, 54)
        "t_flow": raw["b_flow"].reshape(C_FLOW, 1).astype(jnp.float32),
        "w1": w1_folded.T.astype(jnp.bfloat16),                         # (32, 18)
        "s1": s1.reshape(C1, 1).astype(jnp.float32),
        # fold conv bias into BN shift: (y + b)*s + t == y*s + (b*s + t)
        "t1": (raw["b1"] * s1 + t1).reshape(C1, 1).astype(jnp.float32),
        "w2": raw["w2"].T.astype(jnp.bfloat16),                         # (64, 288)
        "s2": s2.reshape(C2, 1).astype(jnp.float32),
        "t2": (raw["b2"] * s2 + t2).reshape(C2, 1).astype(jnp.float32),
    }


# ----------------------------------------------------------------------------
# Pure-JAX f32 reference (follows the PyTorch graph literally: unfolded cat)
# ----------------------------------------------------------------------------
def reference_forward(x_nchw, raw):
    x = jnp.transpose(x_nchw, (0, 2, 3, 1)).astype(jnp.float32)        # NHWC

    def conv3x3(inp, w_flat):
        cin, cout = inp.shape[-1], w_flat.shape[-1]
        w = w_flat.reshape(3, 3, cin, cout)                            # (kh,kw,ci,co)
        return jax.lax.conv_general_dilated(
            inp, w, window_strides=(1, 1), padding="SAME",
            dimension_numbers=("NHWC", "HWIO", "NHWC"),
            precision=jax.lax.Precision.HIGHEST)

    flow = conv3x3(x, raw["w_flow"]) + raw["b_flow"]                   # flow_extractor
    cat = jnp.concatenate([flow] * 5, axis=-1)                         # cat([x]*5, 1)
    s1, t1 = _bn_fold(raw["g1"], raw["be1"], raw["m1"], raw["v1"])
    h = jnp.maximum((conv3x3(cat, raw["w1"]) + raw["b1"]) * s1 + t1, 0.0)
    s2, t2 = _bn_fold(raw["g2"], raw["be2"], raw["m2"], raw["v2"])
    h = jnp.maximum((conv3x3(h, raw["w2"]) + raw["b2"]) * s2 + t2, 0.0)
    pooled = jnp.mean(h, axis=(1, 2))                                  # AvgPool2d(1)
    return pooled.reshape(x_nchw.shape[0], -1, 1, 1)


if __name__ == "__main__":
    key = jax.random.PRNGKey(0)
    k_x, k_p = jax.random.split(key)

    # input: batch=2, 6 channels (2 stacked RGB frames), 16x16 spatial (NCHW)
    x = jax.random.normal(k_x, (2, 6, 16, 16), jnp.float32)
    raw = init_raw_params(k_p)
    params = prepare_params(raw)

    out = jax.block_until_ready(jax.jit(combined_flow_forward)(x, params))
    assert out.shape == (2, 64, 1, 1), out.shape
    assert bool(jnp.all(jnp.isfinite(out)))

    # Correctness: compare the fused Pallas forward (bf16 MXU inputs, folded
    # concat/bias/BN, K-packed taps) against the literal f32 reference graph.
    ref = reference_forward(x, raw)
    scale = max(1.0, float(jnp.max(jnp.abs(ref))))
    max_err = float(jnp.max(jnp.abs(out - ref)))
    assert max_err < 5e-2 * scale, f"mismatch vs reference: max abs err = {max_err}"
    print("KERNEL_OK")
</pallas_src>

<mosaic_0001>
module attributes {stable_mosaic.version = 11 : i64} {
  func.func @_fused_forward_kernel(%arg0: i32, %arg1: memref<1x6x256xf32, #tpu.memory_space<vmem>>, %arg2: memref<9x256xf32, #tpu.memory_space<vmem>>, %arg3: memref<2x54xbf16, #tpu.memory_space<vmem>>, %arg4: memref<2x1xf32, #tpu.memory_space<vmem>>, %arg5: memref<32x18xbf16, #tpu.memory_space<vmem>>, %arg6: memref<32x1xf32, #tpu.memory_space<vmem>>, %arg7: memref<32x1xf32, #tpu.memory_space<vmem>>, %arg8: memref<64x288xbf16, #tpu.memory_space<vmem>>, %arg9: memref<64x1xf32, #tpu.memory_space<vmem>>, %arg10: memref<64x1xf32, #tpu.memory_space<vmem>>, %arg11: memref<1x64x1xf32, #tpu.memory_space<vmem>>) attributes {dimension_semantics = [#tpu.dimension_semantics<parallel>], iteration_bounds = array<i64: 2>, scalar_prefetch = 0 : i64, scratch_operands = 0 : i64, tpu.core_type = #tpu.core_type<tc>, window_params = [{transform_indices = @transform_0, window_bounds = array<i64: 1, 6, 256>}, {pipeline_mode = #tpu.pipeline_mode<synchronous>, transform_indices = @transform_1, window_bounds = array<i64: 9, 256>}, {pipeline_mode = #tpu.pipeline_mode<synchronous>, transform_indices = @transform_2, window_bounds = array<i64: 2, 54>}, {pipeline_mode = #tpu.pipeline_mode<synchronous>, transform_indices = @transform_3, window_bounds = array<i64: 2, 1>}, {pipeline_mode = #tpu.pipeline_mode<synchronous>, transform_indices = @transform_4, window_bounds = array<i64: 32, 18>}, {pipeline_mode = #tpu.pipeline_mode<synchronous>, transform_indices = @transform_5, window_bounds = array<i64: 32, 1>}, {pipeline_mode = #tpu.pipeline_mode<synchronous>, transform_indices = @transform_6, window_bounds = array<i64: 32, 1>}, {pipeline_mode = #tpu.pipeline_mode<synchronous>, transform_indices = @transform_7, window_bounds = array<i64: 64, 288>}, {pipeline_mode = #tpu.pipeline_mode<synchronous>, transform_indices = @transform_8, window_bounds = array<i64: 64, 1>}, {pipeline_mode = #tpu.pipeline_mode<synchronous>, transform_indices = @transform_9, window_bounds = array<i64: 64, 1>}, {transform_indices = @transform_10, window_bounds = array<i64: 1, 64, 1>}]} {
    %c0 = arith.constant 0 : index
    %c0_0 = arith.constant 0 : index
    %c0_1 = arith.constant 0 : index
    %0 = vector.load %arg1[%c0, %c0_0, %c0_1] : memref<1x6x256xf32, #tpu.memory_space<vmem>>, vector<1x6x256xf32>
    %1 = vector.shape_cast %0 : vector<1x6x256xf32> to vector<6x256xf32>
    %c0_2 = arith.constant 0 : index
    %c0_3 = arith.constant 0 : index
    %2 = vector.load %arg2[%c0_2, %c0_3] : memref<9x256xf32, #tpu.memory_space<vmem>>, vector<9x256xf32>
    %c17_i32 = arith.constant 17 : i32
    %3 = tpu.dynamic_rotate %1 by %c17_i32 dim 1 : vector<6x256xf32>, i32 -> vector<6x256xf32>
    %4 = vector.extract_strided_slice %2 {offsets = [0, 0], sizes = [1, 256], strides = [1, 1]} : vector<9x256xf32> to vector<1x256xf32>
    %5 = vector.broadcast %4 : vector<1x256xf32> to vector<6x256xf32>
    %6 = arith.mulf %3, %5 : vector<6x256xf32>
    %c16_i32 = arith.constant 16 : i32
    %7 = tpu.dynamic_rotate %1 by %c16_i32 dim 1 : vector<6x256xf32>, i32 -> vector<6x256xf32>
    %8 = vector.extract_strided_slice %2 {offsets = [1, 0], sizes = [1, 256], strides = [1, 1]} : vector<9x256xf32> to vector<1x256xf32>
    %9 = vector.broadcast %8 : vector<1x256xf32> to vector<6x256xf32>
    %10 = arith.mulf %7, %9 : vector<6x256xf32>
    %c15_i32 = arith.constant 15 : i32
    %11 = tpu.dynamic_rotate %1 by %c15_i32 dim 1 : vector<6x256xf32>, i32 -> vector<6x256xf32>
    %12 = vector.extract_strided_slice %2 {offsets = [2, 0], sizes = [1, 256], strides = [1, 1]} : vector<9x256xf32> to vector<1x256xf32>
    %13 = vector.broadcast %12 : vector<1x256xf32> to vector<6x256xf32>
    %14 = arith.mulf %11, %13 : vector<6x256xf32>
    %c1_i32 = arith.constant 1 : i32
    %15 = tpu.dynamic_rotate %1 by %c1_i32 dim 1 : vector<6x256xf32>, i32 -> vector<6x256xf32>
    %16 = vector.extract_strided_slice %2 {offsets = [3, 0], sizes = [1, 256], strides = [1, 1]} : vector<9x256xf32> to vector<1x256xf32>
    %17 = vector.broadcast %16 : vector<1x256xf32> to vector<6x256xf32>
    %18 = arith.mulf %15, %17 : vector<6x256xf32>
    %19 = vector.extract_strided_slice %2 {offsets = [4, 0], sizes = [1, 256], strides = [1, 1]} : vector<9x256xf32> to vector<1x256xf32>
    %20 = vector.broadcast %19 : vector<1x256xf32> to vector<6x256xf32>
    %21 = arith.mulf %1, %20 : vector<6x256xf32>
    %c255_i32 = arith.constant 255 : i32
    %22 = tpu.dynamic_rotate %1 by %c255_i32 dim 1 : vector<6x256xf32>, i32 -> vector<6x256xf32>
    %23 = vector.extract_strided_slice %2 {offsets = [5, 0], sizes = [1, 256], strides = [1, 1]} : vector<9x256xf32> to vector<1x256xf32>
    %24 = vector.broadcast %23 : vector<1x256xf32> to vector<6x256xf32>
    %25 = arith.mulf %22, %24 : vector<6x256xf32>
    %c241_i32 = arith.constant 241 : i32
    %26 = tpu.dynamic_rotate %1 by %c241_i32 dim 1 : vector<6x256xf32>, i32 -> vector<6x256xf32>
    %27 = vector.extract_strided_slice %2 {offsets = [6, 0], sizes = [1, 256], strides = [1, 1]} : vector<9x256xf32> to vector<1x256xf32>
    %28 = vector.broadcast %27 : vector<1x256xf32> to vector<6x256xf32>
    %29 = arith.mulf %26, %28 : vector<6x256xf32>
    %c240_i32 = arith.constant 240 : i32
    %30 = tpu.dynamic_rotate %1 by %c240_i32 dim 1 : vector<6x256xf32>, i32 -> vector<6x256xf32>
    %31 = vector.extract_strided_slice %2 {offsets = [7, 0], sizes = [1, 256], strides = [1, 1]} : vector<9x256xf32> to vector<1x256xf32>
    %32 = vector.broadcast %31 : vector<1x256xf32> to vector<6x256xf32>
    %33 = arith.mulf %30, %32 : vector<6x256xf32>
    %c239_i32 = arith.constant 239 : i32
    %34 = tpu.dynamic_rotate %1 by %c239_i32 dim 1 : vector<6x256xf32>, i32 -> vector<6x256xf32>
    %35 = vector.extract_strided_slice %2 {offsets = [8, 0], sizes = [1, 256], strides = [1, 1]} : vector<9x256xf32> to vector<1x256xf32>
    %36 = vector.broadcast %35 : vector<1x256xf32> to vector<6x256xf32>
    %37 = arith.mulf %34, %36 : vector<6x256xf32>
    %38 = tpu.concatenate %6, %10, %14, %18, %21, %25, %29, %33, %37 in 0 : vector<6x256xf32>, vector<6x256xf32>, vector<6x256xf32>, vector<6x256xf32>, vector<6x256xf32>, vector<6x256xf32>, vector<6x256xf32>, vector<6x256xf32>, vector<6x256xf32> -> vector<54x256xf32>
    %39 = arith.truncf %38 : vector<54x256xf32> to vector<54x256xbf16>
    %c0_4 = arith.constant 0 : index
    %c0_5 = arith.constant 0 : index
    %40 = vector.load %arg3[%c0_4, %c0_5] : memref<2x54xbf16, #tpu.memory_space<vmem>>, vector<2x54xbf16>
    %cst = arith.constant dense<0.000000e+00> : vector<2x256xf32>
    %41 = tpu.matmul %40, %39, %cst {dimension_numbers = #tpu.dot_dimension_numbers<[1], [0], [0], [1], [0, 0, 1, 1], [], []>} : vector<2x54xbf16>, vector<54x256xbf16>, vector<2x256xf32> -> vector<2x256xf32>
    %c0_6 = arith.constant 0 : index
    %c0_7 = arith.constant 0 : index
    %42 = vector.load %arg4[%c0_6, %c0_7] : memref<2x1xf32, #tpu.memory_space<vmem>>, vector<2x1xf32>
    %43 = vector.broadcast %42 : vector<2x1xf32> to vector<2x256xf32>
    %44 = arith.addf %41, %43 : vector<2x256xf32>
    %c17_i32_8 = arith.constant 17 : i32
    %45 = tpu.dynamic_rotate %44 by %c17_i32_8 dim 1 : vector<2x256xf32>, i32 -> vector<2x256xf32>
    %46 = vector.extract_strided_slice %2 {offsets = [0, 0], sizes = [1, 256], strides = [1, 1]} : vector<9x256xf32> to vector<1x256xf32>
    %47 = vector.broadcast %46 : vector<1x256xf32> to vector<2x256xf32>
    %48 = arith.mulf %45, %47 : vector<2x256xf32>
    %c16_i32_9 = arith.constant 16 : i32
    %49 = tpu.dynamic_rotate %44 by %c16_i32_9 dim 1 : vector<2x256xf32>, i32 -> vector<2x256xf32>
    %50 = vector.extract_strided_slice %2 {offsets = [1, 0], sizes = [1, 256], strides = [1, 1]} : vector<9x256xf32> to vector<1x256xf32>
    %51 = vector.broadcast %50 : vector<1x256xf32> to vector<2x256xf32>
    %52 = arith.mulf %49, %51 : vector<2x256xf32>
    %c15_i32_10 = arith.constant 15 : i32
    %53 = tpu.dynamic_rotate %44 by %c15_i32_10 dim 1 : vector<2x256xf32>, i32 -> vector<2x256xf32>
    %54 = vector.extract_strided_slice %2 {offsets = [2, 0], sizes = [1, 256], strides = [1, 1]} : vector<9x256xf32> to vector<1x256xf32>
    %55 = vector.broadcast %54 : vector<1x256xf32> to vector<2x256xf32>
    %56 = arith.mulf %53, %55 : vector<2x256xf32>
    %c1_i32_11 = arith.constant 1 : i32
    %57 = tpu.dynamic_rotate %44 by %c1_i32_11 dim 1 : vector<2x256xf32>, i32 -> vector<2x256xf32>
    %58 = vector.extract_strided_slice %2 {offsets = [3, 0], sizes = [1, 256], strides = [1, 1]} : vector<9x256xf32> to vector<1x256xf32>
    %59 = vector.broadcast %58 : vector<1x256xf32> to vector<2x256xf32>
    %60 = arith.mulf %57, %59 : vector<2x256xf32>
    %61 = vector.extract_strided_slice %2 {offsets = [4, 0], sizes = [1, 256], strides = [1, 1]} : vector<9x256xf32> to vector<1x256xf32>
    %62 = vector.broadcast %61 : vector<1x256xf32> to vector<2x256xf32>
    %63 = arith.mulf %44, %62 : vector<2x256xf32>
    %c255_i32_12 = arith.constant 255 : i32
    %64 = tpu.dynamic_rotate %44 by %c255_i32_12 dim 1 : vector<2x256xf32>, i32 -> vector<2x256xf32>
    %65 = vector.extract_strided_slice %2 {offsets = [5, 0], sizes = [1, 256], strides = [1, 1]} : vector<9x256xf32> to vector<1x256xf32>
    %66 = vector.broadcast %65 : vector<1x256xf32> to vector<2x256xf32>
    %67 = arith.mulf %64, %66 : vector<2x256xf32>
    %c241_i32_13 = arith.constant 241 : i32
    %68 = tpu.dynamic_rotate %44 by %c241_i32_13 dim 1 : vector<2x256xf32>, i32 -> vector<2x256xf32>
    %69 = vector.extract_strided_slice %2 {offsets = [6, 0], sizes = [1, 256], strides = [1, 1]} : vector<9x256xf32> to vector<1x256xf32>
    %70 = vector.broadcast %69 : vector<1x256xf32> to vector<2x256xf32>
    %71 = arith.mulf %68, %70 : vector<2x256xf32>
    %c240_i32_14 = arith.constant 240 : i32
    %72 = tpu.dynamic_rotate %44 by %c240_i32_14 dim 1 : vector<2x256xf32>, i32 -> vector<2x256xf32>
    %73 = vector.extract_strided_slice %2 {offsets = [7, 0], sizes = [1, 256], strides = [1, 1]} : vector<9x256xf32> to vector<1x256xf32>
    %74 = vector.broadcast %73 : vector<1x256xf32> to vector<2x256xf32>
    %75 = arith.mulf %72, %74 : vector<2x256xf32>
    %c239_i32_15 = arith.constant 239 : i32
    %76 = tpu.dynamic_rotate %44 by %c239_i32_15 dim 1 : vector<2x256xf32>, i32 -> vector<2x256xf32>
    %77 = vector.extract_strided_slice %2 {offsets = [8, 0], sizes = [1, 256], strides = [1, 1]} : vector<9x256xf32> to vector<1x256xf32>
    %78 = vector.broadcast %77 : vector<1x256xf32> to vector<2x256xf32>
    %79 = arith.mulf %76, %78 : vector<2x256xf32>
    %80 = tpu.concatenate %48, %52, %56, %60, %63, %67, %71, %75, %79 in 0 : vector<2x256xf32>, vector<2x256xf32>, vector<2x256xf32>, vector<2x256xf32>, vector<2x256xf32>, vector<2x256xf32>, vector<2x256xf32>, vector<2x256xf32>, vector<2x256xf32> -> vector<18x256xf32>
    %81 = arith.truncf %80 : vector<18x256xf32> to vector<18x256xbf16>
    %c0_16 = arith.constant 0 : index
    %c0_17 = arith.constant 0 : index
    %82 = vector.load %arg5[%c0_16, %c0_17] : memref<32x18xbf16, #tpu.memory_space<vmem>>, vector<32x18xbf16>
    %cst_18 = arith.constant dense<0.000000e+00> : vector<32x256xf32>
    %83 = tpu.matmul %82, %81, %cst_18 {dimension_numbers = #tpu.dot_dimension_numbers<[1], [0], [0], [1], [0, 0, 1, 1], [], []>} : vector<32x18xbf16>, vector<18x256xbf16>, vector<32x256xf32> -> vector<32x256xf32>
    %c0_19 = arith.constant 0 : index
    %c0_20 = arith.constant 0 : index
    %84 = vector.load %arg6[%c0_19, %c0_20] : memref<32x1xf32, #tpu.memory_space<vmem>>, vector<32x1xf32>
    %85 = vector.broadcast %84 : vector<32x1xf32> to vector<32x256xf32>
    %86 = arith.mulf %83, %85 : vector<32x256xf32>
    %c0_21 = arith.constant 0 : index
    %c0_22 = arith.constant 0 : index
    %87 = vector.load %arg7[%c0_21, %c0_22] : memref<32x1xf32, #tpu.memory_space<vmem>>, vector<32x1xf32>
    %88 = vector.broadcast %87 : vector<32x1xf32> to vector<32x256xf32>
    %89 = arith.addf %86, %88 : vector<32x256xf32>
    %cst_23 = arith.constant 0.000000e+00 : f32
    %90 = vector.broadcast %cst_23 : f32 to vector<32x256xf32>
    %91 = arith.maximumf %89, %90 : vector<32x256xf32>
    %c17_i32_24 = arith.constant 17 : i32
    %92 = tpu.dynamic_rotate %91 by %c17_i32_24 dim 1 : vector<32x256xf32>, i32 -> vector<32x256xf32>
    %93 = vector.extract_strided_slice %2 {offsets = [0, 0], sizes = [1, 256], strides = [1, 1]} : vector<9x256xf32> to vector<1x256xf32>
    %94 = vector.broadcast %93 : vector<1x256xf32> to vector<32x256xf32>
    %95 = arith.mulf %92, %94 : vector<32x256xf32>
    %c16_i32_25 = arith.constant 16 : i32
    %96 = tpu.dynamic_rotate %91 by %c16_i32_25 dim 1 : vector<32x256xf32>, i32 -> vector<32x256xf32>
    %97 = vector.extract_strided_slice %2 {offsets = [1, 0], sizes = [1, 256], strides = [1, 1]} : vector<9x256xf32> to vector<1x256xf32>
    %98 = vector.broadcast %97 : vector<1x256xf32> to vector<32x256xf32>
    %99 = arith.mulf %96, %98 : vector<32x256xf32>
    %c15_i32_26 = arith.constant 15 : i32
    %100 = tpu.dynamic_rotate %91 by %c15_i32_26 dim 1 : vector<32x256xf32>, i32 -> vector<32x256xf32>
    %101 = vector.extract_strided_slice %2 {offsets = [2, 0], sizes = [1, 256], strides = [1, 1]} : vector<9x256xf32> to vector<1x256xf32>
    %102 = vector.broadcast %101 : vector<1x256xf32> to vector<32x256xf32>
    %103 = arith.mulf %100, %102 : vector<32x256xf32>
    %c1_i32_27 = arith.constant 1 : i32
    %104 = tpu.dynamic_rotate %91 by %c1_i32_27 dim 1 : vector<32x256xf32>, i32 -> vector<32x256xf32>
    %105 = vector.extract_strided_slice %2 {offsets = [3, 0], sizes = [1, 256], strides = [1, 1]} : vector<9x256xf32> to vector<1x256xf32>
    %106 = vector.broadcast %105 : vector<1x256xf32> to vector<32x256xf32>
    %107 = arith.mulf %104, %106 : vector<32x256xf32>
    %108 = vector.extract_strided_slice %2 {offsets = [4, 0], sizes = [1, 256], strides = [1, 1]} : vector<9x256xf32> to vector<1x256xf32>
    %109 = vector.broadcast %108 : vector<1x256xf32> to vector<32x256xf32>
    %110 = arith.mulf %91, %109 : vector<32x256xf32>
    %c255_i32_28 = arith.constant 255 : i32
    %111 = tpu.dynamic_rotate %91 by %c255_i32_28 dim 1 : vector<32x256xf32>, i32 -> vector<32x256xf32>
    %112 = vector.extract_strided_slice %2 {offsets = [5, 0], sizes = [1, 256], strides = [1, 1]} : vector<9x256xf32> to vector<1x256xf32>
    %113 = vector.broadcast %112 : vector<1x256xf32> to vector<32x256xf32>
    %114 = arith.mulf %111, %113 : vector<32x256xf32>
    %c241_i32_29 = arith.constant 241 : i32
    %115 = tpu.dynamic_rotate %91 by %c241_i32_29 dim 1 : vector<32x256xf32>, i32 -> vector<32x256xf32>
    %116 = vector.extract_strided_slice %2 {offsets = [6, 0], sizes = [1, 256], strides = [1, 1]} : vector<9x256xf32> to vector<1x256xf32>
    %117 = vector.broadcast %116 : vector<1x256xf32> to vector<32x256xf32>
    %118 = arith.mulf %115, %117 : vector<32x256xf32>
    %c240_i32_30 = arith.constant 240 : i32
    %119 = tpu.dynamic_rotate %91 by %c240_i32_30 dim 1 : vector<32x256xf32>, i32 -> vector<32x256xf32>
    %120 = vector.extract_strided_slice %2 {offsets = [7, 0], sizes = [1, 256], strides = [1, 1]} : vector<9x256xf32> to vector<1x256xf32>
    %121 = vector.broadcast %120 : vector<1x256xf32> to vector<32x256xf32>
    %122 = arith.mulf %119, %121 : vector<32x256xf32>
    %c239_i32_31 = arith.constant 239 : i32
    %123 = tpu.dynamic_rotate %91 by %c239_i32_31 dim 1 : vector<32x256xf32>, i32 -> vector<32x256xf32>
    %124 = vector.extract_strided_slice %2 {offsets = [8, 0], sizes = [1, 256], strides = [1, 1]} : vector<9x256xf32> to vector<1x256xf32>
    %125 = vector.broadcast %124 : vector<1x256xf32> to vector<32x256xf32>
    %126 = arith.mulf %123, %125 : vector<32x256xf32>
    %127 = tpu.concatenate %95, %99, %103, %107, %110, %114, %118, %122, %126 in 0 : vector<32x256xf32>, vector<32x256xf32>, vector<32x256xf32>, vector<32x256xf32>, vector<32x256xf32>, vector<32x256xf32>, vector<32x256xf32>, vector<32x256xf32>, vector<32x256xf32> -> vector<288x256xf32>
    %128 = arith.truncf %127 : vector<288x256xf32> to vector<288x256xbf16>
    %c0_32 = arith.constant 0 : index
    %c0_33 = arith.constant 0 : index
    %129 = vector.load %arg8[%c0_32, %c0_33] : memref<64x288xbf16, #tpu.memory_space<vmem>>, vector<64x288xbf16>
    %cst_34 = arith.constant dense<0.000000e+00> : vector<64x256xf32>
    %130 = tpu.matmul %129, %128, %cst_34 {dimension_numbers = #tpu.dot_dimension_numbers<[1], [0], [0], [1], [0, 0, 1, 1], [], []>} : vector<64x288xbf16>, vector<288x256xbf16>, vector<64x256xf32> -> vector<64x256xf32>
    %c0_35 = arith.constant 0 : index
    %c0_36 = arith.constant 0 : index
    %131 = vector.load %arg9[%c0_35, %c0_36] : memref<64x1xf32, #tpu.memory_space<vmem>>, vector<64x1xf32>
    %132 = vector.broadcast %131 : vector<64x1xf32> to vector<64x256xf32>
    %133 = arith.mulf %130, %132 : vector<64x256xf32>
    %c0_37 = arith.constant 0 : index
    %c0_38 = arith.constant 0 : index
    %134 = vector.load %arg10[%c0_37, %c0_38] : memref<64x1xf32, #tpu.memory_space<vmem>>, vector<64x1xf32>
    %135 = vector.broadcast %134 : vector<64x1xf32> to vector<64x256xf32>
    %136 = arith.addf %133, %135 : vector<64x256xf32>
    %cst_39 = arith.constant 0.000000e+00 : f32
    %137 = vector.broadcast %cst_39 : f32 to vector<64x256xf32>
    %138 = arith.maximumf %136, %137 : vector<64x256xf32>
    %cst_40 = arith.constant dense<0.000000e+00> : vector<64xf32>
    %139 = vector.multi_reduction <add>, %138, %cst_40 [1] : vector<64x256xf32> to vector<64xf32>
    %140 = vector.shape_cast %139 : vector<64xf32> to vector<64x1xf32>
    %cst_41 = arith.constant 3.906250e-03 : f32
    %141 = vector.broadcast %cst_41 : f32 to vector<64x1xf32>
    %142 = arith.mulf %140, %141 : vector<64x1xf32>
    %c0_42 = arith.constant 0 : index
    %c0_43 = arith.constant 0 : index
    %c0_44 = arith.constant 0 : index
    %143 = vector.load %arg11[%c0_42, %c0_43, %c0_44] : memref<1x64x1xf32, #tpu.memory_space<vmem>>, vector<1x64x1xf32>
    %144 = vector.shape_cast %143 : vector<1x64x1xf32> to vector<64x1xf32>
    %145 = vector.shape_cast %142 : vector<64x1xf32> to vector<1x64x1xf32>
    tpu.vector_store %arg11[%c0_42, %c0_43, %c0_44], %145 {strides = array<i32>} : memref<1x64x1xf32, #tpu.memory_space<vmem>>, vector<1x64x1xf32>,
    return
  }
  func.func @transform_0(%arg0: i32) -> (i32, i32, i32) {
    %c0_i32 = arith.constant 0 : i32
    %c0_i32_0 = arith.constant 0 : i32
    %c0_i32_1 = arith.constant 0 : i32
    return %arg0, %c0_i32, %c0_i32_0 : i32, i32, i32
  }
  func.func @transform_1(%arg0: i32) -> (i32, i32) {
    %c0_i32 = arith.constant 0 : i32
    %c0_i32_0 = arith.constant 0 : i32
    %c0_i32_1 = arith.constant 0 : i32
    return %c0_i32, %c0_i32_0 : i32, i32
  }
  func.func @transform_2(%arg0: i32) -> (i32, i32) {
    %c0_i32 = arith.constant 0 : i32
    %c0_i32_0 = arith.constant 0 : i32
    %c0_i32_1 = arith.constant 0 : i32
    return %c0_i32, %c0_i32_0 : i32, i32
  }
  func.func @transform_3(%arg0: i32) -> (i32, i32) {
    %c0_i32 = arith.constant 0 : i32
    %c0_i32_0 = arith.constant 0 : i32
    %c0_i32_1 = arith.constant 0 : i32
    return %c0_i32, %c0_i32_0 : i32, i32
  }
  func.func @transform_4(%arg0: i32) -> (i32, i32) {
    %c0_i32 = arith.constant 0 : i32
    %c0_i32_0 = arith.constant 0 : i32
    %c0_i32_1 = arith.constant 0 : i32
    return %c0_i32, %c0_i32_0 : i32, i32
  }
  func.func @transform_5(%arg0: i32) -> (i32, i32) {
    %c0_i32 = arith.constant 0 : i32
    %c0_i32_0 = arith.constant 0 : i32
    %c0_i32_1 = arith.constant 0 : i32
    return %c0_i32, %c0_i32_0 : i32, i32
  }
  func.func @transform_6(%arg0: i32) -> (i32, i32) {
    %c0_i32 = arith.constant 0 : i32
    %c0_i32_0 = arith.constant 0 : i32
    %c0_i32_1 = arith.constant 0 : i32
    return %c0_i32, %c0_i32_0 : i32, i32
  }
  func.func @transform_7(%arg0: i32) -> (i32, i32) {
    %c0_i32 = arith.constant 0 : i32
    %c0_i32_0 = arith.constant 0 : i32
    %c0_i32_1 = arith.constant 0 : i32
    return %c0_i32, %c0_i32_0 : i32, i32
  }
  func.func @transform_8(%arg0: i32) -> (i32, i32) {
    %c0_i32 = arith.constant 0 : i32
    %c0_i32_0 = arith.constant 0 : i32
    %c0_i32_1 = arith.constant 0 : i32
    return %c0_i32, %c0_i32_0 : i32, i32
  }
  func.func @transform_9(%arg0: i32) -> (i32, i32) {
    %c0_i32 = arith.constant 0 : i32
    %c0_i32_0 = arith.constant 0 : i32
    %c0_i32_1 = arith.constant 0 : i32
    return %c0_i32, %c0_i32_0 : i32, i32
  }
  func.func @transform_10(%arg0: i32) -> (i32, i32, i32) {
    %c0_i32 = arith.constant 0 : i32
    %c0_i32_0 = arith.constant 0 : i32
    %c0_i32_1 = arith.constant 0 : i32
    return %arg0, %c0_i32, %c0_i32_0 : i32, i32, i32
  }
}

</mosaic_0001>

<llo_original>
// kernel: combined_flow_forward.1
$region0: #{combined_flow_forward.1}
  #allocation0 [shape = 'u32[]', space=smem, size = 0x4, offset = 0x4, fixed_abs, tag = 'smem constant byte address 0x4 - core index']
  #allocation1 [shape = 'u32[144,128]{1,0:T(1,128)}', space=vmem, size = 0x12000, scoped, tag = 'internal scratch']
  %s0 = inlined_call_operand.vmem [shape: f32[2,6,256], index: 0, kind: input, shape index: {}]
  %s1 = inlined_call_operand.vmem [shape: f32[9,256], index: 1, kind: input, shape index: {}]
  %s2 = inlined_call_operand.vmem [shape: bf16[2,54], index: 2, kind: input, shape index: {}]
  %s3 = inlined_call_operand.vmem [shape: f32[2,1], index: 3, kind: input, shape index: {}]
  %s4 = inlined_call_operand.vmem [shape: bf16[32,18], index: 4, kind: input, shape index: {}]
  %s5 = inlined_call_operand.vmem [shape: f32[32,1], index: 5, kind: input, shape index: {}]
  %s6 = inlined_call_operand.vmem [shape: f32[32,1], index: 6, kind: input, shape index: {}]
  %s7 = inlined_call_operand.vmem [shape: bf16[64,288], index: 7, kind: input, shape index: {}]
  %s8 = inlined_call_operand.vmem [shape: f32[64,1], index: 8, kind: input, shape index: {}]
  %s9 = inlined_call_operand.vmem [shape: f32[64,1], index: 9, kind: input, shape index: {}]
  %s10 = inlined_call_operand.vmem [shape: f32[2,64,1], index: 10, kind: output, shape index: {}]
  %s11 = sld [smem:[#allocation0]]
  $region73: #{combined_flow_forward.1} parent=0
    _
  %s13 = ssub.s32 1, %s11
  %s14 = scalar_select 0, %s13, %s11
  loop: start=0, step=1, limit=4
  $region2: #{combined_flow_forward.1} parent=0 // loop_pre_header
    _
  $region3: #{combined_flow_forward.1} parent=0 // loop_header
    %s16 = sphi 0, %s20
    %p17 = scmp.ge.s32.totalorder %s16, 4
    %s26 = sphi 0, %s28
    %s29 = sphi 0, %s26
    %s30 = sphi 0, %s29
    %s46 = sphi 0, %s30
    %s50 = sphi 0, %s50
    %s52 = sphi 0, %s50
    %s53 = sphi 0, %s52
    %s67 = sphi 0, %s53
    %s71 = sphi 0, %s71
    %s73 = sphi 0, %s71
    %s74 = sphi 0, %s73
    %s88 = sphi 0, %s74
    %s92 = sphi 0, %s92
    %s94 = sphi 0, %s92
    %s95 = sphi 0, %s94
    %s109 = sphi 0, %s95
    %s113 = sphi 0, %s113
    %s115 = sphi 0, %s113
    %s116 = sphi 0, %s115
    %s130 = sphi 0, %s116
    %s134 = sphi 0, %s134
    %s136 = sphi 0, %s134
    %s137 = sphi 0, %s136
    %s151 = sphi 0, %s137
    %s155 = sphi 0, %s155
    %s157 = sphi 0, %s155
    %s158 = sphi 0, %s157
    %s172 = sphi 0, %s158
    %s176 = sphi 0, %s176
    %s178 = sphi 0, %s176
    %s179 = sphi 0, %s178
    %s193 = sphi 0, %s179
    %s197 = sphi 0, %s197
    %s199 = sphi 0, %s197
    %s200 = sphi 0, %s199
    %s214 = sphi 0, %s200
    %s218 = sphi 0, %s218
    %s220 = sphi 0, %s218
    %s221 = sphi 0, %s220
    %s235 = sphi 0, %s221
    %s241 = sphi 0, %s243
    %s244 = sphi 0, %s241
    %s245 = sphi 0, %s244
    %s261 = sphi 0, %s245
  $region4: #{combined_flow_forward.1} parent=0 // loop_header_branch
    %19 = sbr.rel (%p17) target = $region8
  $region5: #{combined_flow_forward.1} parent=0 // loop_body
    %s21 = ssub.s32 %s16, 1
    %s22 = ssub.s32 %s16, 2
    %s23 = sadd.s32 %s16, 1
    %s24 = ssub.s32 %s16, %s23
    %p25 = scmp.eq.s32.totalorder %s24, 0
    %s27 = sadd.s32 %s26, 1
    %s28 = scalar_select %p25, %s26, %s27
    %p31 = pneg %p25
    %p32 = scmp.eq.s32.totalorder %s16, 1
    %p33 = por %p31, %p32
    %p34 = scmp.ne.s32.totalorder %s26, %s29
    %p35 = scmp.eq.s32.totalorder %s16, 0
    %p36 = por %p34, %p35
    %p37 = scmp.ne.s32.totalorder %s26, %s29
    %p38 = scmp.eq.s32.totalorder %s21, 1
    %p39 = por %p37, %p38
    %p40 = scmp.ne.s32.totalorder %s29, %s30
    %p41 = scmp.eq.s32.totalorder %s21, 0
    %p42 = por %p40, %p41
    %p43 = scmp.ne.s32.totalorder %s29, %s30
    %p44 = scmp.eq.s32.totalorder %s22, 1
    %p45 = por %p43, %p44
    %p47 = scmp.ne.s32.totalorder %s30, %s46
    %p48 = scmp.eq.s32.totalorder %s22, 0
    %p49 = por %p47, %p48
    %s51 = sadd.s32 %s50, 1
    %p54 = scmp.eq.s32.totalorder %s16, 1
    %p55 = scmp.ne.s32.totalorder %s50, %s52
    %p56 = scmp.eq.s32.totalorder %s16, 0
    %p57 = por %p55, %p56
    %p58 = scmp.ne.s32.totalorder %s50, %s52
    %p59 = scmp.eq.s32.totalorder %s21, 1
    %p60 = por %p58, %p59
    %p61 = scmp.ne.s32.totalorder %s52, %s53
    %p62 = scmp.eq.s32.totalorder %s21, 0
    %p63 = por %p61, %p62
    %p64 = scmp.ne.s32.totalorder %s52, %s53
    %p65 = scmp.eq.s32.totalorder %s22, 1
    %p66 = por %p64, %p65
    %p68 = scmp.ne.s32.totalorder %s53, %s67
    %p69 = scmp.eq.s32.totalorder %s22, 0
    %p70 = por %p68, %p69
    %s72 = sadd.s32 %s71, 1
    %p75 = scmp.eq.s32.totalorder %s16, 1
    %p76 = scmp.ne.s32.totalorder %s71, %s73
    %p77 = scmp.eq.s32.totalorder %s16, 0
    %p78 = por %p76, %p77
    %p79 = scmp.ne.s32.totalorder %s71, %s73
    %p80 = scmp.eq.s32.totalorder %s21, 1
    %p81 = por %p79, %p80
    %p82 = scmp.ne.s32.totalorder %s73, %s74
    %p83 = scmp.eq.s32.totalorder %s21, 0
    %p84 = por %p82, %p83
    %p85 = scmp.ne.s32.totalorder %s73, %s74
    %p86 = scmp.eq.s32.totalorder %s22, 1
    %p87 = por %p85, %p86
    %p89 = scmp.ne.s32.totalorder %s74, %s88
    %p90 = scmp.eq.s32.totalorder %s22, 0
    %p91 = por %p89, %p90
    %s93 = sadd.s32 %s92, 1
    %p96 = scmp.eq.s32.totalorder %s16, 1
    %p97 = scmp.ne.s32.totalorder %s92, %s94
    %p98 = scmp.eq.s32.totalorder %s16, 0
    %p99 = por %p97, %p98
    %p100 = scmp.ne.s32.totalorder %s92, %s94
    %p101 = scmp.eq.s32.totalorder %s21, 1
    %p102 = por %p100, %p101
    %p103 = scmp.ne.s32.totalorder %s94, %s95
    %p104 = scmp.eq.s32.totalorder %s21, 0
    %p105 = por %p103, %p104
    %p106 = scmp.ne.s32.totalorder %s94, %s95
    %p107 = scmp.eq.s32.totalorder %s22, 1
    %p108 = por %p106, %p107
    %p110 = scmp.ne.s32.totalorder %s95, %s109
    %p111 = scmp.eq.s32.totalorder %s22, 0
    %p112 = por %p110, %p111
    %s114 = sadd.s32 %s113, 1
    %p117 = scmp.eq.s32.totalorder %s16, 1
    %p118 = scmp.ne.s32.totalorder %s113, %s115
    %p119 = scmp.eq.s32.totalorder %s16, 0
    %p120 = por %p118, %p119
    %p121 = scmp.ne.s32.totalorder %s113, %s115
    %p122 = scmp.eq.s32.totalorder %s21, 1
    %p123 = por %p121, %p122
    %p124 = scmp.ne.s32.totalorder %s115, %s116
    %p125 = scmp.eq.s32.totalorder %s21, 0
    %p126 = por %p124, %p125
    %p127 = scmp.ne.s32.totalorder %s115, %s116
    %p128 = scmp.eq.s32.totalorder %s22, 1
    %p129 = por %p127, %p128
    %p131 = scmp.ne.s32.totalorder %s116, %s130
    %p132 = scmp.eq.s32.totalorder %s22, 0
    %p133 = por %p131, %p132
    %s135 = sadd.s32 %s134, 1
    %p138 = scmp.eq.s32.totalorder %s16, 1
    %p139 = scmp.ne.s32.totalorder %s134, %s136
    %p140 = scmp.eq.s32.totalorder %s16, 0
    %p141 = por %p139, %p140
    %p142 = scmp.ne.s32.totalorder %s134, %s136
    %p143 = scmp.eq.s32.totalorder %s21, 1
    %p144 = por %p142, %p143
    %p145 = scmp.ne.s32.totalorder %s136, %s137
    %p146 = scmp.eq.s32.totalorder %s21, 0
    %p147 = por %p145, %p146
    %p148 = scmp.ne.s32.totalorder %s136, %s137
    %p149 = scmp.eq.s32.totalorder %s22, 1
    %p150 = por %p148, %p149
    %p152 = scmp.ne.s32.totalorder %s137, %s151
    %p153 = scmp.eq.s32.totalorder %s22, 0
    %p154 = por %p152, %p153
    %s156 = sadd.s32 %s155, 1
    %p159 = scmp.eq.s32.totalorder %s16, 1
    %p160 = scmp.ne.s32.totalorder %s155, %s157
    %p161 = scmp.eq.s32.totalorder %s16, 0
    %p162 = por %p160, %p161
    %p163 = scmp.ne.s32.totalorder %s155, %s157
    %p164 = scmp.eq.s32.totalorder %s21, 1
    %p165 = por %p163, %p164
    %p166 = scmp.ne.s32.totalorder %s157, %s158
    %p167 = scmp.eq.s32.totalorder %s21, 0
    %p168 = por %p166, %p167
    %p169 = scmp.ne.s32.totalorder %s157, %s158
    %p170 = scmp.eq.s32.totalorder %s22, 1
    %p171 = por %p169, %p170
    %p173 = scmp.ne.s32.totalorder %s158, %s172
    %p174 = scmp.eq.s32.totalorder %s22, 0
    %p175 = por %p173, %p174
    %s177 = sadd.s32 %s176, 1
    %p180 = scmp.eq.s32.totalorder %s16, 1
    %p181 = scmp.ne.s32.totalorder %s176, %s178
    %p182 = scmp.eq.s32.totalorder %s16, 0
    %p183 = por %p181, %p182
    %p184 = scmp.ne.s32.totalorder %s176, %s178
    %p185 = scmp.eq.s32.totalorder %s21, 1
    %p186 = por %p184, %p185
    %p187 = scmp.ne.s32.totalorder %s178, %s179
    %p188 = scmp.eq.s32.totalorder %s21, 0
    %p189 = por %p187, %p188
    %p190 = scmp.ne.s32.totalorder %s178, %s179
    %p191 = scmp.eq.s32.totalorder %s22, 1
    %p192 = por %p190, %p191
    %p194 = scmp.ne.s32.totalorder %s179, %s193
    %p195 = scmp.eq.s32.totalorder %s22, 0
    %p196 = por %p194, %p195
    %s198 = sadd.s32 %s197, 1
    %p201 = scmp.eq.s32.totalorder %s16, 1
    %p202 = scmp.ne.s32.totalorder %s197, %s199
    %p203 = scmp.eq.s32.totalorder %s16, 0
    %p204 = por %p202, %p203
    %p205 = scmp.ne.s32.totalorder %s197, %s199
    %p206 = scmp.eq.s32.totalorder %s21, 1
    %p207 = por %p205, %p206
    %p208 = scmp.ne.s32.totalorder %s199, %s200
    %p209 = scmp.eq.s32.totalorder %s21, 0
    %p210 = por %p208, %p209
    %p211 = scmp.ne.s32.totalorder %s199, %s200
    %p212 = scmp.eq.s32.totalorder %s22, 1
    %p213 = por %p211, %p212
    %p215 = scmp.ne.s32.totalorder %s200, %s214
    %p216 = scmp.eq.s32.totalorder %s22, 0
    %p217 = por %p215, %p216
    %s219 = sadd.s32 %s218, 1
    %p222 = scmp.eq.s32.totalorder %s16, 1
    %p223 = scmp.ne.s32.totalorder %s218, %s220
    %p224 = scmp.eq.s32.totalorder %s16, 0
    %p225 = por %p223, %p224
    %p226 = scmp.ne.s32.totalorder %s218, %s220
    %p227 = scmp.eq.s32.totalorder %s21, 1
    %p228 = por %p226, %p227
    %p229 = scmp.ne.s32.totalorder %s220, %s221
    %p230 = scmp.eq.s32.totalorder %s21, 0
    %p231 = por %p229, %p230
    %p232 = scmp.ne.s32.totalorder %s220, %s221
    %p233 = scmp.eq.s32.totalorder %s22, 1
    %p234 = por %p232, %p233
    %p236 = scmp.ne.s32.totalorder %s221, %s235
    %p237 = scmp.eq.s32.totalorder %s22, 0
    %p238 = por %p236, %p237
    %s239 = ssub.s32 %s16, %s23
    %p240 = scmp.eq.s32.totalorder %s239, 0
    %s242 = sadd.s32 %s241, 1
    %s243 = scalar_select %p240, %s241, %s242
    %p246 = pneg %p240
    %p247 = scmp.eq.s32.totalorder %s16, 1
    %p248 = por %p246, %p247
    %p249 = scmp.ne.s32.totalorder %s241, %s244
    %p250 = scmp.eq.s32.totalorder %s16, 0
    %p251 = por %p249, %p250
    %p252 = scmp.ne.s32.totalorder %s241, %s244
    %p253 = scmp.eq.s32.totalorder %s21, 1
    %p254 = por %p252, %p253
    %p255 = scmp.ne.s32.totalorder %s244, %s245
    %p256 = scmp.eq.s32.totalorder %s21, 0
    %p257 = por %p255, %p256
    %p258 = scmp.ne.s32.totalorder %s244, %s245
    %p259 = scmp.eq.s32.totalorder %s22, 1
    %p260 = por %p258, %p259
    %p262 = scmp.ne.s32.totalorder %s245, %s261
    %p263 = scmp.eq.s32.totalorder %s22, 0
    %p264 = por %p262, %p263
    %p265 = scmp.le.s32.totalorder 1, %s16
    %p266 = scmp.lt.s32.totalorder %s16, 3
    %p267 = pnand %p265, %p266
    %p268 = pneg %p267
    // Predicated region
    $region9: #{combined_flow_forward.1} parent=5 // pred_check
      _
    $region10: #{combined_flow_forward.1} parent=5 // pred_check_branch
      %270 = sbr.rel (%p267) target = $region12
    $region11: #{combined_flow_forward.1} parent=5 // pred_region
      %s271 = ssub.s32 %s16, 1
      // Predicated region
      $region13: #{combined_flow_forward.1} parent=11 // pred_check
        %p272 = pneg %p63
      $region14: #{combined_flow_forward.1} parent=11 // pred_check_branch
        %274 = sbr.rel (%p272) target = $region16
      $region15: #{combined_flow_forward.1} parent=11 // pred_region
        _
      $region16: #{combined_flow_forward.1} parent=11 // pred_fallthru
        _
      // Predicated region
      $region17: #{combined_flow_forward.1} parent=11 // pred_check
        %p275 = pneg %p84
      $region18: #{combined_flow_forward.1} parent=11 // pred_check_branch
        %277 = sbr.rel (%p275) target = $region20
      $region19: #{combined_flow_forward.1} parent=11 // pred_region
        _
      $region20: #{combined_flow_forward.1} parent=11 // pred_fallthru
        _
      // Predicated region
      $region21: #{combined_flow_forward.1} parent=11 // pred_check
        %p278 = pneg %p105
      $region22: #{combined_flow_forward.1} parent=11 // pred_check_branch
        %280 = sbr.rel (%p278) target = $region24
      $region23: #{combined_flow_forward.1} parent=11 // pred_region
        _
      $region24: #{combined_flow_forward.1} parent=11 // pred_fallthru
        _
      // Predicated region
      $region25: #{combined_flow_forward.1} parent=11 // pred_check
        %p281 = pneg %p126
      $region26: #{combined_flow_forward.1} parent=11 // pred_check_branch
        %283 = sbr.rel (%p281) target = $region28
      $region27: #{combined_flow_forward.1} parent=11 // pred_region
        _
      $region28: #{combined_flow_forward.1} parent=11 // pred_fallthru
        _
      // Predicated region
      $region29: #{combined_flow_forward.1} parent=11 // pred_check
        %p284 = pneg %p147
      $region30: #{combined_flow_forward.1} parent=11 // pred_check_branch
        %286 = sbr.rel (%p284) target = $region32
      $region31: #{combined_flow_forward.1} parent=11 // pred_region
        _
      $region32: #{combined_flow_forward.1} parent=11 // pred_fallthru
        _
      // Predicated region
      $region33: #{combined_flow_forward.1} parent=11 // pred_check
        %p287 = pneg %p168
      $region34: #{combined_flow_forward.1} parent=11 // pred_check_branch
        %289 = sbr.rel (%p287) target = $region36
      $region35: #{combined_flow_forward.1} parent=11 // pred_region
        _
      $region36: #{combined_flow_forward.1} parent=11 // pred_fallthru
        _
      // Predicated region
      $region37: #{combined_flow_forward.1} parent=11 // pred_check
        %p290 = pneg %p189
      $region38: #{combined_flow_forward.1} parent=11 // pred_check_branch
        %292 = sbr.rel (%p290) target = $region40
      $region39: #{combined_flow_forward.1} parent=11 // pred_region
        _
      $region40: #{combined_flow_forward.1} parent=11 // pred_fallthru
        _
      // Predicated region
      $region41: #{combined_flow_forward.1} parent=11 // pred_check
        %p293 = pneg %p210
      $region42: #{combined_flow_forward.1} parent=11 // pred_check_branch
        %295 = sbr.rel (%p293) target = $region44
      $region43: #{combined_flow_forward.1} parent=11 // pred_region
        _
      $region44: #{combined_flow_forward.1} parent=11 // pred_fallthru
        _
      // Predicated region
      $region45: #{combined_flow_forward.1} parent=11 // pred_check
        %p296 = pneg %p231
      $region46: #{combined_flow_forward.1} parent=11 // pred_check_branch
        %298 = sbr.rel (%p296) target = $region48
      $region47: #{combined_flow_forward.1} parent=11 // pred_region
        _
      $region48: #{combined_flow_forward.1} parent=11 // pred_fallthru
        _
    $region12: #{combined_flow_forward.1} parent=5 // pred_fallthru
      _
    %p299 = scmp.lt.s32.totalorder %s16, 2
    // Predicated region
    $region49: #{combined_flow_forward.1} parent=5 // pred_check
      %p300 = pneg %p299
    $region50: #{combined_flow_forward.1} parent=5 // pred_check_branch
      %302 = sbr.rel (%p300) target = $region52
    $region51: #{combined_flow_forward.1} parent=5 // pred_region
      // Predicated region
      $region53: #{combined_flow_forward.1} parent=51 // pred_check
        %p303 = pneg %p36
      $region54: #{combined_flow_forward.1} parent=51 // pred_check_branch
        %305 = sbr.rel (%p303) target = $region56
      $region55: #{combined_flow_forward.1} parent=51 // pred_region
        %p306 = scmp.lt.s32.totalorder %s16, 1
        %s307 = scalar_select %p306, %s16, 1
        %s308 = smul.addr %s307, 2
        %s309 = smul.addr %s308, 8
        %s310 = scalar_lea.vmem %s0, %s309
      $region56: #{combined_flow_forward.1} parent=51 // pred_fallthru
        _
    $region52: #{combined_flow_forward.1} parent=5 // pred_fallthru
      _
    %p311 = scmp.le.s32.totalorder 1, %s16
    %p312 = scmp.lt.s32.totalorder %s16, 3
    %p313 = pnand %p311, %p312
    %p314 = pneg %p313
    // Predicated region
    $region57: #{combined_flow_forward.1} parent=5 // pred_check
      _
    $region58: #{combined_flow_forward.1} parent=5 // pred_check_branch
      %316 = sbr.rel (%p313) target = $region60
    $region59: #{combined_flow_forward.1} parent=5 // pred_region
      %s317 = ssub.s32 %s16, 1
      %p318 = scmp.lt.s32.totalorder %s21, 1
      %s319 = scalar_select %p318, %s21, 1
      %s320 = smul.addr %s319, 2
      %s321 = smul.addr %s320, 8
      %s322 = scalar_lea.vmem %s0, %s321
      %p323 = pneg %p42
      %p324 = pneg %p39
      %p325 = pneg %p63
      %p326 = pneg %p60
      %p327 = pneg %p84
      %p328 = pneg %p81
      %p329 = pneg %p105
      %p330 = pneg %p102
      %p331 = pneg %p126
      %p332 = pneg %p123
      %p333 = pneg %p147
      %p334 = pneg %p144
      %p335 = pneg %p168
      %p336 = pneg %p165
      %p337 = pneg %p189
      %p338 = pneg %p186
      %p339 = pneg %p210
      %p340 = pneg %p207
      %p341 = pneg %p231
      %p342 = pneg %p228
      %p343 = pneg %p257
      %p344 = pneg %p254
      %p345 = scmp.lt.s32.totalorder %s21, 1
      %s346 = scalar_select %p345, %s21, 1
      %s347 = smul.addr %s346, 8
      %s348 = smul.addr %s347, 8
      %s349 = scalar_lea.vmem %s10, %s348
      %p350 = scmp.lt.s32.totalorder %s21, 1
      %s351 = scalar_select %p350, %s21, 1
      %s352 = smul.addr %s351, 2
      %s353 = smul.addr %s352, 8
      %s354 = scalar_lea.vmem %s0, %s353
      %p355 = scmp.lt.s32.totalorder %s21, 1
      %s356 = scalar_select %p355, %s21, 1
      %s357 = smul.addr %s356, 8
      %s358 = smul.addr %s357, 8
      %s359 = scalar_lea.vmem %s10, %s358
      %v361 = vld [vmem:[%s354] sm:$0x3f]
      %v362 = vld [vmem:[%s354 + $0x8] sm:$0x3f]
      %v363 = vld [vmem:[%s1] sm:$0xff]
      %v364 = vld [vmem:[%s1 + $0x8] sm:$0xff]
      %v365 = vld [vmem:[%s1 + $0x10] sm:$0x1]
      %v366 = vld [vmem:[%s1 + $0x18] sm:$0x1]
      %367 = vrot.lane.b32.xlu0 %v361, 17
      %v368 = vpop.permute.xlu0 %367
      %369 = vrot.lane.b32.xlu0 %v362, 17
      %v370 = vpop.permute.xlu0 %369
      %v371 = vlaneseq
      %v372 = vand.u32 %v371, 127
      %vm373 = vcmp.lt.s32.totalorder %v372, 17
      %v374 = vsel %vm373, %v368, %v370
      %v375 = vsel %vm373, %v370, %v368
      %v376 = vlaneseq
      %v377 = vshrl.u32 %v376, 7
      %v378 = vsub.s32 0, %v377
      %v379 = vrot.slane %v363, %v378
      %v380 = vlaneseq
      %v381 = vshrl.u32 %v380, 7
      %v382 = vsub.s32 0, %v381
      %v383 = vrot.slane %v364, %v382
      %v384 = vmul.f32 %v375, %v379
      %v385 = vmul.f32 %v374, %v383
      %386 = vrot.lane.b32.xlu0 %v361, 16
      %v387 = vpop.permute.xlu0 %386
      %388 = vrot.lane.b32.xlu0 %v362, 16
      %v389 = vpop.permute.xlu0 %388
      %vm390 = vcmp.lt.s32.totalorder %v372, 16
      %v391 = vsel %vm390, %v387, %v389
      %v392 = vsel %vm390, %v389, %v387
      %v393 = vlaneseq
      %v394 = vshrl.u32 %v393, 7
      %v395 = vsub.s32 1, %v394
      %v396 = vrot.slane %v363, %v395
      %v397 = vlaneseq
      %v398 = vshrl.u32 %v397, 7
      %v399 = vsub.s32 1, %v398
      %v400 = vrot.slane %v364, %v399
      %v401 = vmul.f32 %v392, %v396
      %v402 = vmul.f32 %v391, %v400
      %403 = vrot.lane.b32.xlu0 %v361, 15
      %v404 = vpop.permute.xlu0 %403
      %405 = vrot.lane.b32.xlu0 %v362, 15
      %v406 = vpop.permute.xlu0 %405
      %vm407 = vcmp.lt.s32.totalorder %v372, 15
      %v408 = vsel %vm407, %v404, %v406
      %v409 = vsel %vm407, %v406, %v404
      %v410 = vlaneseq
      %v411 = vshrl.u32 %v410, 7
      %v412 = vsub.s32 2, %v411
      %v413 = vrot.slane %v363, %v412
      %v414 = vlaneseq
      %v415 = vshrl.u32 %v414, 7
      %v416 = vsub.s32 2, %v415
      %v417 = vrot.slane %v364, %v416
      %v418 = vmul.f32 %v409, %v413
      %v419 = vmul.f32 %v408, %v417
      %420 = vrot.lane.b32.xlu0 %v361, 1
      %v421 = vpop.permute.xlu0 %420
      %422 = vrot.lane.b32.xlu0 %v362, 1
      %v423 = vpop.permute.xlu0 %422
      %vm424 = vcmp.lt.s32.totalorder %v372, 1
      %v425 = vsel %vm424, %v421, %v423
      %v426 = vsel %vm424, %v423, %v421
      %v427 = vlaneseq
      %v428 = vshrl.u32 %v427, 7
      %v429 = vsub.s32 3, %v428
      %v430 = vrot.slane %v363, %v429
      %v431 = vlaneseq
      %v432 = vshrl.u32 %v431, 7
      %v433 = vsub.s32 3, %v432
      %v434 = vrot.slane %v364, %v433
      %v435 = vmul.f32 %v426, %v430
      %v436 = vmul.f32 %v425, %v434
      %v437 = vlaneseq
      %v438 = vshrl.u32 %v437, 7
      %v439 = vsub.s32 4, %v438
      %v440 = vrot.slane %v363, %v439
      %v441 = vlaneseq
      %v442 = vshrl.u32 %v441, 7
      %v443 = vsub.s32 4, %v442
      %v444 = vrot.slane %v364, %v443
      %v445 = vmul.f32 %v361, %v440
      %v446 = vmul.f32 %v362, %v444
      %447 = vrot.lane.b32.xlu0 %v361, 127
      %v448 = vpop.permute.xlu0 %447
      %449 = vrot.lane.b32.xlu0 %v362, 127
      %v450 = vpop.permute.xlu0 %449
      %vm451 = vcmp.lt.s32.totalorder %v372, 127
      %v452 = vsel %vm451, %v448, %v450
      %v453 = vsel %vm451, %v450, %v448
      %v454 = vlaneseq
      %v455 = vshrl.u32 %v454, 7
      %v456 = vsub.s32 5, %v455
      %v457 = vrot.slane %v363, %v456
      %v458 = vlaneseq
      %v459 = vshrl.u32 %v458, 7
      %v460 = vsub.s32 5, %v459
      %v461 = vrot.slane %v364, %v460
      %v462 = vmul.f32 %v452, %v457
      %v463 = vmul.f32 %v453, %v461
      %464 = vrot.lane.b32.xlu0 %v361, 113
      %v465 = vpop.permute.xlu0 %464
      %466 = vrot.lane.b32.xlu0 %v362, 113
      %v467 = vpop.permute.xlu0 %466
      %vm468 = vcmp.lt.s32.totalorder %v372, 113
      %v469 = vsel %vm468, %v465, %v467
      %v470 = vsel %vm468, %v467, %v465
      %v471 = vlaneseq
      %v472 = vshrl.u32 %v471, 7
      %v473 = vsub.s32 6, %v472
      %v474 = vrot.slane %v363, %v473
      %v475 = vlaneseq
      %v476 = vshrl.u32 %v475, 7
      %v477 = vsub.s32 6, %v476
      %v478 = vrot.slane %v364, %v477
      %v479 = vmul.f32 %v469, %v474
      %v480 = vmul.f32 %v470, %v478
      %481 = vrot.lane.b32.xlu0 %v361, 112
      %v482 = vpop.permute.xlu0 %481
      %483 = vrot.lane.b32.xlu0 %v362, 112
      %v484 = vpop.permute.xlu0 %483
      %vm485 = vcmp.lt.s32.totalorder %v372, 112
      %v486 = vsel %vm485, %v482, %v484
      %v487 = vsel %vm485, %v484, %v482
      %v488 = vlaneseq
      %v489 = vshrl.u32 %v488, 7
      %v490 = vsub.s32 7, %v489
      %v491 = vrot.slane %v363, %v490
      %v492 = vlaneseq
      %v493 = vshrl.u32 %v492, 7
      %v494 = vsub.s32 7, %v493
      %v495 = vrot.slane %v364, %v494
      %v496 = vmul.f32 %v486, %v491
      %v497 = vmul.f32 %v487, %v495
      %498 = vrot.lane.b32.xlu0 %v361, 111
      %v499 = vpop.permute.xlu0 %498
      %500 = vrot.lane.b32.xlu0 %v362, 111
      %v501 = vpop.permute.xlu0 %500
      %vm502 = vcmp.lt.s32.totalorder %v372, 111
      %v503 = vsel %vm502, %v499, %v501
      %v504 = vsel %vm502, %v501, %v499
      %v505 = vlaneseq
      %v506 = vshrl.u32 %v505, 7
      %v507 = vsub.s32 0, %v506
      %v508 = vrot.slane %v365, %v507
      %v509 = vlaneseq
      %v510 = vshrl.u32 %v509, 7
      %v511 = vsub.s32 0, %v510
      %v512 = vrot.slane %v366, %v511
      %v513 = vmul.f32 %v503, %v508
      %v514 = vmul.f32 %v504, %v512
      %v517 = vrot.slane %v401, 2
      %v518 = vrot.slane %v402, 2
      %v523 = vrot.slane %v418, 4
      %v524 = vrot.slane %v419, 4
      %v529 = vrot.slane %v435, 6
      %v530 = vrot.slane %v436, 6
      %v535 = vrot.slane %v462, 2
      %v536 = vrot.slane %v463, 2
      %v541 = vrot.slane %v479, 4
      %v542 = vrot.slane %v480, 4
      %v547 = vrot.slane %v496, 6
      %v548 = vrot.slane %v497, 6
      %vm551 = vcmask 1045504
      %v552 = vsel %vm551, %v384, %v517
      %v553 = vsel %vm551, %v385, %v518
      %vm554 = vcmask 1043456
      %v555 = vsel %vm554, %v517, %v523
      %v556 = vsel %vm554, %v518, %v524
      %vm557 = vcmask 1041408
      %v558 = vsel %vm557, %v523, %v529
      %v559 = vsel %vm557, %v524, %v530
      %v560 = vsel %vm551, %v445, %v535
      %v561 = vsel %vm551, %v446, %v536
      %v562 = vsel %vm554, %v535, %v541
      %v563 = vsel %vm554, %v536, %v542
      %v564 = vsel %vm557, %v541, %v547
      %v565 = vsel %vm557, %v542, %v548
      %v566 = vpack.c.bf16 %v555, %v552
      %v567 = vpack.c.bf16 %v556, %v553
      %v568 = vpack.c.bf16 %v560, %v558
      %v569 = vpack.c.bf16 %v561, %v559
      %v570 = vpack.c.bf16 %v564, %v562
      %v571 = vpack.c.bf16 %v565, %v563
      %v572 = vpack.c.bf16 %v513, %v513
      %v573 = vpack.c.bf16 %v514, %v514
      %v574 = vld [vmem:[%s2] sm:$0x1]
      %v575 = vld [vmem:[%s3] sm:$0x3]
      %577 = vset.pattern.permute.xlu0 0
      %578 = vperm.xlu0 %577, %v575
      %v579 = vpop.permute.xlu0 %578
      %vm581 = vcmask 441344
      %v583 = vsel %vm581, %v574, 0
      %vm585 = vcmask 1042432
      %v587 = vsel %vm585, %v572, 0
      %v590 = vsel %vm585, %v573, 0
      %592 = vmatprep.subr.bf16.mxu0 %v567
      %593 = vmatpush1.bf16.msra.mxu0 %v566
      %594 = vmatprep.subr.bf16.mxu0 %v569
      %595 = vmatpush1.bf16.msra.mxu0 %v568
      %596 = vmatprep.subr.bf16.mxu0 %v571
      %597 = vmatpush1.bf16.msra.mxu0 %v570
      %598 = vmatprep.subr.bf16.mxu0 %v590
      %599 = vmatpush1.bf16.msra.mxu0 %v587
      %600 = vmatprep.subr.bf16.mxu0 0
      %601 = vmatpush1.bf16.msra.mxu0 0
      %602 = vmatprep.subr.bf16.mxu0 0
      %603 = vmatpush1.bf16.msra.mxu0 0
      %604 = vmatprep.subr.bf16.mxu0 0
      %605 = vmatpush1.bf16.msra.mxu0 0
      %606 = vmatprep.subr.bf16.mxu0 0
      %607 = vmatpush1.bf16.msra.mxu0 0
      %608 = vmatprep.subr.bf16.mxu0 0
      %609 = vmatpush1.bf16.msra.mxu0 0
      %610 = vmatprep.subr.bf16.mxu0 0
      %611 = vmatpush1.bf16.msra.mxu0 0
      %612 = vmatprep.subr.bf16.mxu0 0
      %613 = vmatpush1.bf16.msra.mxu0 0
      %614 = vmatprep.subr.bf16.mxu0 0
      %615 = vmatpush1.bf16.msra.mxu0 0
      %616 = vmatprep.subr.bf16.mxu0 0
      %617 = vmatpush1.bf16.msra.mxu0 0
      %618 = vmatprep.subr.bf16.mxu0 0
      %619 = vmatpush1.bf16.msra.mxu0 0
      %620 = vmatprep.subr.bf16.mxu0 0
      %621 = vmatpush1.bf16.msra.mxu0 0
      %622 = vmatprep.subr.bf16.mxu0 0
      %623 = vmatpush1.bf16.msra.mxu0 0
      %624 = vmatprep.mubr.bf16.mxu0 0
      %625 = vmatmul.mubr.bf16.gmra.mrb[0].mxu0 %v583
      %v626 = vpop.f32.mrb[0].mxu0
      %v627 = vadd.f32 %v579, %v626
      %v628 = vpop.f32.mrb[0].mxu0
      %v629 = vadd.f32 %v579, %v628
      %v630 = vpop.f32.mrb[0].mxu0
      %v631 = vpop.f32.mrb[0].mxu0
      %632 = vdwg.mxu0
      %633 = vrot.lane.b32.xlu0 %v627, 17
      %v634 = vpop.permute.xlu0 %633
      %635 = vrot.lane.b32.xlu0 %v629, 17
      %v636 = vpop.permute.xlu0 %635
      %v637 = vsel %vm373, %v634, %v636
      %v638 = vsel %vm373, %v636, %v634
      %v639 = vmul.f32 %v638, %v379
      %v640 = vmul.f32 %v637, %v383
      %641 = vrot.lane.b32.xlu0 %v627, 16
      %v642 = vpop.permute.xlu0 %641
      %643 = vrot.lane.b32.xlu0 %v629, 16
      %v644 = vpop.permute.xlu0 %643
      %v645 = vsel %vm390, %v642, %v644
      %v646 = vsel %vm390, %v644, %v642
      %v647 = vmul.f32 %v646, %v396
      %v648 = vmul.f32 %v645, %v400
      %649 = vrot.lane.b32.xlu0 %v627, 15
      %v650 = vpop.permute.xlu0 %649
      %651 = vrot.lane.b32.xlu0 %v629, 15
      %v652 = vpop.permute.xlu0 %651
      %v653 = vsel %vm407, %v650, %v652
      %v654 = vsel %vm407, %v652, %v650
      %v655 = vmul.f32 %v654, %v413
      %v656 = vmul.f32 %v653, %v417
      %657 = vrot.lane.b32.xlu0 %v627, 1
      %v658 = vpop.permute.xlu0 %657
      %659 = vrot.lane.b32.xlu0 %v629, 1
      %v660 = vpop.permute.xlu0 %659
      %v661 = vsel %vm424, %v658, %v660
      %v662 = vsel %vm424, %v660, %v658
      %v663 = vmul.f32 %v662, %v430
      %v664 = vmul.f32 %v661, %v434
      %v665 = vmul.f32 %v627, %v440
      %v666 = vmul.f32 %v629, %v444
      %667 = vrot.lane.b32.xlu0 %v627, 127
      %v668 = vpop.permute.xlu0 %667
      %669 = vrot.lane.b32.xlu0 %v629, 127
      %v670 = vpop.permute.xlu0 %669
      %v671 = vsel %vm451, %v668, %v670
      %v672 = vsel %vm451, %v670, %v668
      %v673 = vmul.f32 %v671, %v457
      %v674 = vmul.f32 %v672, %v461
      %675 = vrot.lane.b32.xlu0 %v627, 113
      %v676 = vpop.permute.xlu0 %675
      %677 = vrot.lane.b32.xlu0 %v629, 113
      %v678 = vpop.permute.xlu0 %677
      %v679 = vsel %vm468, %v676, %v678
      %v680 = vsel %vm468, %v678, %v676
      %v681 = vmul.f32 %v679, %v474
      %v682 = vmul.f32 %v680, %v478
      %683 = vrot.lane.b32.xlu0 %v627, 112
      %v684 = vpop.permute.xlu0 %683
      %685 = vrot.lane.b32.xlu0 %v629, 112
      %v686 = vpop.permute.xlu0 %685
      %v687 = vsel %vm485, %v684, %v686
      %v688 = vsel %vm485, %v686, %v684
      %v689 = vmul.f32 %v687, %v491
      %v690 = vmul.f32 %v688, %v495
      %691 = vrot.lane.b32.xlu0 %v627, 111
      %v692 = vpop.permute.xlu0 %691
      %693 = vrot.lane.b32.xlu0 %v629, 111
      %v694 = vpop.permute.xlu0 %693
      %v695 = vsel %vm502, %v692, %v694
      %v696 = vsel %vm502, %v694, %v692
      %v697 = vmul.f32 %v695, %v508
      %v698 = vmul.f32 %v696, %v512
      %v701 = vrot.slane %v647, 6
      %v702 = vrot.slane %v648, 6
      %v707 = vrot.slane %v655, 4
      %v708 = vrot.slane %v656, 4
      %v713 = vrot.slane %v663, 2
      %v714 = vrot.slane %v664, 2
      %v719 = vrot.slane %v673, 6
      %v720 = vrot.slane %v674, 6
      %v725 = vrot.slane %v681, 4
      %v726 = vrot.slane %v682, 4
      %v731 = vrot.slane %v689, 2
      %v732 = vrot.slane %v690, 2
      %v735 = vsel %vm557, %v639, %v701
      %v736 = vsel %vm557, %v640, %v702
      %v737 = vsel %vm554, %v735, %v707
      %v738 = vsel %vm554, %v736, %v708
      %v739 = vsel %vm551, %v737, %v713
      %v740 = vsel %vm551, %v738, %v714
      %v741 = vsel %vm557, %v665, %v719
      %v742 = vsel %vm557, %v666, %v720
      %v743 = vsel %vm554, %v741, %v725
      %v744 = vsel %vm554, %v742, %v726
      %v745 = vsel %vm551, %v743, %v731
      %v746 = vsel %vm551, %v744, %v732
      %v747 = vpack.c.bf16 %v745, %v739
      %v748 = vpack.c.bf16 %v746, %v740
      %v749 = vpack.c.bf16 %v697, %v697
      %v750 = vpack.c.bf16 %v698, %v698
      %v751 = vld [vmem:[%s4] sm:$0xf]
      %v752 = vld [vmem:[%s4 + $0x4] sm:$0xf]
      %v753 = vld [vmem:[%s4 + $0x8] sm:$0xf]
      %v754 = vld [vmem:[%s4 + $0xc] sm:$0xf]
      %v759 = vunpack.c.l.b16 %v751
      %v760 = vunpack.c.l.b16 %v752
      %v761 = vunpack.c.l.b16 %v753
      %v762 = vunpack.c.l.b16 %v754
      %v763 = vpack.c.b16 %v760, %v759
      %v764 = vpack.c.b16 %v762, %v761
      %vm765 = vcmask 146432
      %v767 = vsel %vm765, %v763, 0
      %v770 = vsel %vm765, %v764, 0
      %vm772 = vcmask 1040384
      %v774 = vsel %vm772, %v749, 0
      %v777 = vsel %vm772, %v750, 0
      %779 = vmatprep.subr.bf16.mxu0 %v748
      %780 = vmatpush1.bf16.msra.mxu0 %v747
      %781 = vmatprep.subr.bf16.mxu0 %v777
      %782 = vmatpush1.bf16.msra.mxu0 %v774
      %783 = vmatprep.subr.bf16.mxu0 0
      %784 = vmatpush1.bf16.msra.mxu0 0
      %785 = vmatprep.subr.bf16.mxu0 0
      %786 = vmatpush1.bf16.msra.mxu0 0
      %787 = vmatprep.subr.bf16.mxu0 0
      %788 = vmatpush1.bf16.msra.mxu0 0
      %789 = vmatprep.subr.bf16.mxu0 0
      %790 = vmatpush1.bf16.msra.mxu0 0
      %791 = vmatprep.subr.bf16.mxu0 0
      %792 = vmatpush1.bf16.msra.mxu0 0
      %793 = vmatprep.subr.bf16.mxu0 0
      %794 = vmatpush1.bf16.msra.mxu0 0
      %795 = vmatprep.subr.bf16.mxu0 0
      %796 = vmatpush1.bf16.msra.mxu0 0
      %797 = vmatprep.subr.bf16.mxu0 0
      %798 = vmatpush1.bf16.msra.mxu0 0
      %799 = vmatprep.subr.bf16.mxu0 0
      %800 = vmatpush1.bf16.msra.mxu0 0
      %801 = vmatprep.subr.bf16.mxu0 0
      %802 = vmatpush1.bf16.msra.mxu0 0
      %803 = vmatprep.subr.bf16.mxu0 0
      %804 = vmatpush1.bf16.msra.mxu0 0
      %805 = vmatprep.subr.bf16.mxu0 0
      %806 = vmatpush1.bf16.msra.mxu0 0
      %807 = vmatprep.subr.bf16.mxu0 0
      %808 = vmatpush1.bf16.msra.mxu0 0
      %809 = vmatprep.subr.bf16.mxu0 0
      %810 = vmatpush1.bf16.msra.mxu0 0
      %811 = vmatprep.mubr.bf16.mxu0 0
      %812 = vmatmul.mubr.bf16.gmra.mrb[0].mxu0 %v767
      %v813 = vpop.f32.mrb[0].mxu0
      %v814 = vadd.f32 0.0, %v813
      %v815 = vpop.f32.mrb[0].mxu0
      %v816 = vadd.f32 0.0, %v815
      %v817 = vpop.f32.mrb[0].mxu0
      %v818 = vadd.f32 0.0, %v817
      %v819 = vpop.f32.mrb[0].mxu0
      %v820 = vadd.f32 0.0, %v819
      %821 = vmatprep.mubr.bf16.mxu0 0
      %822 = vmatmul.mubr.bf16.gmra.mrb[0].mxu0 %v770
      %v823 = vpop.f32.mrb[0].mxu0
      %v824 = vadd.f32 0.0, %v823
      %v825 = vpop.f32.mrb[0].mxu0
      %v826 = vadd.f32 0.0, %v825
      %v827 = vpop.f32.mrb[0].mxu0
      %v828 = vadd.f32 0.0, %v827
      %v829 = vpop.f32.mrb[0].mxu0
      %v830 = vadd.f32 0.0, %v829
      %831 = vdwg.mxu0
      %v832 = vld [vmem:[%s5] sm:$0xff]
      %v833 = vld [vmem:[%s5 + $0x8] sm:$0xff]
      %v834 = vld [vmem:[%s5 + $0x10] sm:$0xff]
      %v835 = vld [vmem:[%s5 + $0x18] sm:$0xff]
      %837 = vset.pattern.permute.xlu0 0
      %838 = vperm.xlu0 %837, %v832
      %v839 = vpop.permute.xlu0 %838
      %842 = vset.pattern.permute.xlu0 0
      %843 = vperm.xlu0 %842, %v833
      %v844 = vpop.permute.xlu0 %843
      %847 = vset.pattern.permute.xlu0 0
      %848 = vperm.xlu0 %847, %v834
      %v849 = vpop.permute.xlu0 %848
      %852 = vset.pattern.permute.xlu0 0
      %853 = vperm.xlu0 %852, %v835
      %v854 = vpop.permute.xlu0 %853
      %v856 = vmul.f32 %v814, %v839
      %v857 = vmul.f32 %v816, %v839
      %v858 = vmul.f32 %v818, %v844
      %v859 = vmul.f32 %v820, %v844
      %v860 = vmul.f32 %v824, %v849
      %v861 = vmul.f32 %v826, %v849
      %v862 = vmul.f32 %v828, %v854
      %v863 = vmul.f32 %v830, %v854
      %v864 = vld [vmem:[%s6] sm:$0xff]
      %v865 = vld [vmem:[%s6 + $0x8] sm:$0xff]
      %v866 = vld [vmem:[%s6 + $0x10] sm:$0xff]
      %v867 = vld [vmem:[%s6 + $0x18] sm:$0xff]
      %869 = vset.pattern.permute.xlu0 0
      %870 = vperm.xlu0 %869, %v864
      %v871 = vpop.permute.xlu0 %870
      %874 = vset.pattern.permute.xlu0 0
      %875 = vperm.xlu0 %874, %v865
      %v876 = vpop.permute.xlu0 %875
      %879 = vset.pattern.permute.xlu0 0
      %880 = vperm.xlu0 %879, %v866
      %v881 = vpop.permute.xlu0 %880
      %884 = vset.pattern.permute.xlu0 0
      %885 = vperm.xlu0 %884, %v867
      %v886 = vpop.permute.xlu0 %885
      %v888 = vadd.f32 %v856, %v871
      %v889 = vadd.f32 %v857, %v871
      %v890 = vadd.f32 %v858, %v876
      %v891 = vadd.f32 %v859, %v876
      %v892 = vadd.f32 %v860, %v881
      %v893 = vadd.f32 %v861, %v881
      %v894 = vadd.f32 %v862, %v886
      %v895 = vadd.f32 %v863, %v886
      %v896 = vmax.f32 %v888, 0.0
      %v897 = vmax.f32 %v889, 0.0
      %v898 = vmax.f32 %v890, 0.0
      %v899 = vmax.f32 %v891, 0.0
      %v900 = vmax.f32 %v892, 0.0
      %v901 = vmax.f32 %v893, 0.0
      %v902 = vmax.f32 %v894, 0.0
      %v903 = vmax.f32 %v895, 0.0
      %904 = vrot.lane.b32.xlu0 %v896, 17
      %v905 = vpop.permute.xlu0 %904
      %906 = vrot.lane.b32.xlu0 %v898, 17
      %v907 = vpop.permute.xlu0 %906
      %908 = vrot.lane.b32.xlu0 %v900, 17
      %v909 = vpop.permute.xlu0 %908
      %910 = vrot.lane.b32.xlu0 %v902, 17
      %v911 = vpop.permute.xlu0 %910
      %912 = vrot.lane.b32.xlu0 %v897, 17
      %v913 = vpop.permute.xlu0 %912
      %914 = vrot.lane.b32.xlu0 %v899, 17
      %v915 = vpop.permute.xlu0 %914
      %916 = vrot.lane.b32.xlu0 %v901, 17
      %v917 = vpop.permute.xlu0 %916
      %918 = vrot.lane.b32.xlu0 %v903, 17
      %v919 = vpop.permute.xlu0 %918
      %v920 = vsel %vm373, %v905, %v913
      %v921 = vsel %vm373, %v907, %v915
      %v922 = vsel %vm373, %v909, %v917
      %v923 = vsel %vm373, %v911, %v919
      %v924 = vsel %vm373, %v913, %v905
      %v925 = vsel %vm373, %v915, %v907
      %v926 = vsel %vm373, %v917, %v909
      %v927 = vsel %vm373, %v919, %v911
      %v928 = vmul.f32 %v924, %v379
      %v929 = vmul.f32 %v920, %v383
      %v930 = vmul.f32 %v925, %v379
      %v931 = vmul.f32 %v921, %v383
      %v932 = vmul.f32 %v926, %v379
      %v933 = vmul.f32 %v922, %v383
      %v934 = vmul.f32 %v927, %v379
      %v935 = vmul.f32 %v923, %v383
      %936 = vrot.lane.b32.xlu0 %v896, 16
      %v937 = vpop.permute.xlu0 %936
      %938 = vrot.lane.b32.xlu0 %v898, 16
      %v939 = vpop.permute.xlu0 %938
      %940 = vrot.lane.b32.xlu0 %v900, 16
      %v941 = vpop.permute.xlu0 %940
      %942 = vrot.lane.b32.xlu0 %v902, 16
      %v943 = vpop.permute.xlu0 %942
      %944 = vrot.lane.b32.xlu0 %v897, 16
      %v945 = vpop.permute.xlu0 %944
      %946 = vrot.lane.b32.xlu0 %v899, 16
      %v947 = vpop.permute.xlu0 %946
      %948 = vrot.lane.b32.xlu0 %v901, 16
      %v949 = vpop.permute.xlu0 %948
      %950 = vrot.lane.b32.xlu0 %v903, 16
      %v951 = vpop.permute.xlu0 %950
      %v952 = vsel %vm390, %v937, %v945
      %v953 = vsel %vm390, %v939, %v947
      %v954 = vsel %vm390, %v941, %v949
      %v955 = vsel %vm390, %v943, %v951
      %v956 = vsel %vm390, %v945, %v937
      %v957 = vsel %vm390, %v947, %v939
      %v958 = vsel %vm390, %v949, %v941
      %v959 = vsel %vm390, %v951, %v943
      %v960 = vmul.f32 %v956, %v396
      %v961 = vmul.f32 %v952, %v400
      %v962 = vmul.f32 %v957, %v396
      %v963 = vmul.f32 %v953, %v400
      %v964 = vmul.f32 %v958, %v396
      %v965 = vmul.f32 %v954, %v400
      %v966 = vmul.f32 %v959, %v396
      %v967 = vmul.f32 %v955, %v400
      %968 = vrot.lane.b32.xlu0 %v896, 15
      %v969 = vpop.permute.xlu0 %968
      %970 = vrot.lane.b32.xlu0 %v898, 15
      %v971 = vpop.permute.xlu0 %970
      %972 = vrot.lane.b32.xlu0 %v900, 15
      %v973 = vpop.permute.xlu0 %972
      %974 = vrot.lane.b32.xlu0 %v902, 15
      %v975 = vpop.permute.xlu0 %974
      %976 = vrot.lane.b32.xlu0 %v897, 15
      %v977 = vpop.permute.xlu0 %976
      %978 = vrot.lane.b32.xlu0 %v899, 15
      %v979 = vpop.permute.xlu0 %978
      %980 = vrot.lane.b32.xlu0 %v901, 15
      %v981 = vpop.permute.xlu0 %980
      %982 = vrot.lane.b32.xlu0 %v903, 15
      %v983 = vpop.permute.xlu0 %982
      %v984 = vsel %vm407, %v969, %v977
      %v985 = vsel %vm407, %v971, %v979
      %v986 = vsel %vm407, %v973, %v981
      %v987 = vsel %vm407, %v975, %v983
      %v988 = vsel %vm407, %v977, %v969
      %v989 = vsel %vm407, %v979, %v971
      %v990 = vsel %vm407, %v981, %v973
      %v991 = vsel %vm407, %v983, %v975
      %v992 = vmul.f32 %v988, %v413
      %v993 = vmul.f32 %v984, %v417
      %v994 = vmul.f32 %v989, %v413
      %v995 = vmul.f32 %v985, %v417
      %v996 = vmul.f32 %v990, %v413
      %v997 = vmul.f32 %v986, %v417
      %v998 = vmul.f32 %v991, %v413
      %v999 = vmul.f32 %v987, %v417
      %1000 = vrot.lane.b32.xlu0 %v896, 1
      %v1001 = vpop.permute.xlu0 %1000
      %1002 = vrot.lane.b32.xlu0 %v898, 1
      %v1003 = vpop.permute.xlu0 %1002
      %1004 = vrot.lane.b32.xlu0 %v900, 1
      %v1005 = vpop.permute.xlu0 %1004
      %1006 = vrot.lane.b32.xlu0 %v902, 1
      %v1007 = vpop.permute.xlu0 %1006
      %1008 = vrot.lane.b32.xlu0 %v897, 1
      %v1009 = vpop.permute.xlu0 %1008
      %1010 = vrot.lane.b32.xlu0 %v899, 1
      %v1011 = vpop.permute.xlu0 %1010
      %1012 = vrot.lane.b32.xlu0 %v901, 1
      %v1013 = vpop.permute.xlu0 %1012
      %1014 = vrot.lane.b32.xlu0 %v903, 1
      %v1015 = vpop.permute.xlu0 %1014
      %v1016 = vsel %vm424, %v1001, %v1009
      %v1017 = vsel %vm424, %v1003, %v1011
      %v1018 = vsel %vm424, %v1005, %v1013
      %v1019 = vsel %vm424, %v1007, %v1015
      %v1020 = vsel %vm424, %v1009, %v1001
      %v1021 = vsel %vm424, %v1011, %v1003
      %v1022 = vsel %vm424, %v1013, %v1005
      %v1023 = vsel %vm424, %v1015, %v1007
      %v1024 = vmul.f32 %v1020, %v430
      %v1025 = vmul.f32 %v1016, %v434
      %v1026 = vmul.f32 %v1021, %v430
      %v1027 = vmul.f32 %v1017, %v434
      %v1028 = vmul.f32 %v1022, %v430
      %v1029 = vmul.f32 %v1018, %v434
      %v1030 = vmul.f32 %v1023, %v430
      %v1031 = vmul.f32 %v1019, %v434
      %v1032 = vmul.f32 %v896, %v440
      %v1033 = vmul.f32 %v897, %v444
      %v1034 = vmul.f32 %v898, %v440
      %v1035 = vmul.f32 %v899, %v444
      %v1036 = vmul.f32 %v900, %v440
      %v1037 = vmul.f32 %v901, %v444
      %v1038 = vmul.f32 %v902, %v440
      %v1039 = vmul.f32 %v903, %v444
      %1040 = vrot.lane.b32.xlu0 %v896, 127
      %v1041 = vpop.permute.xlu0 %1040
      %1042 = vrot.lane.b32.xlu0 %v898, 127
      %v1043 = vpop.permute.xlu0 %1042
      %1044 = vrot.lane.b32.xlu0 %v900, 127
      %v1045 = vpop.permute.xlu0 %1044
      %1046 = vrot.lane.b32.xlu0 %v902, 127
      %v1047 = vpop.permute.xlu0 %1046
      %1048 = vrot.lane.b32.xlu0 %v897, 127
      %v1049 = vpop.permute.xlu0 %1048
      %1050 = vrot.lane.b32.xlu0 %v899, 127
      %v1051 = vpop.permute.xlu0 %1050
      %1052 = vrot.lane.b32.xlu0 %v901, 127
      %v1053 = vpop.permute.xlu0 %1052
      %1054 = vrot.lane.b32.xlu0 %v903, 127
      %v1055 = vpop.permute.xlu0 %1054
      %v1056 = vsel %vm451, %v1041, %v1049
      %v1057 = vsel %vm451, %v1043, %v1051
      %v1058 = vsel %vm451, %v1045, %v1053
      %v1059 = vsel %vm451, %v1047, %v1055
      %v1060 = vsel %vm451, %v1049, %v1041
      %v1061 = vsel %vm451, %v1051, %v1043
      %v1062 = vsel %vm451, %v1053, %v1045
      %v1063 = vsel %vm451, %v1055, %v1047
      %v1064 = vmul.f32 %v1056, %v457
      %v1065 = vmul.f32 %v1060, %v461
      %v1066 = vmul.f32 %v1057, %v457
      %v1067 = vmul.f32 %v1061, %v461
      %v1068 = vmul.f32 %v1058, %v457
      %v1069 = vmul.f32 %v1062, %v461
      %v1070 = vmul.f32 %v1059, %v457
      %v1071 = vmul.f32 %v1063, %v461
      %1072 = vrot.lane.b32.xlu0 %v896, 113
      %v1073 = vpop.permute.xlu0 %1072
      %1074 = vrot.lane.b32.xlu0 %v898, 113
      %v1075 = vpop.permute.xlu0 %1074
      %1076 = vrot.lane.b32.xlu0 %v900, 113
      %v1077 = vpop.permute.xlu0 %1076
      %1078 = vrot.lane.b32.xlu0 %v902, 113
      %v1079 = vpop.permute.xlu0 %1078
      %1080 = vrot.lane.b32.xlu0 %v897, 113
      %v1081 = vpop.permute.xlu0 %1080
      %1082 = vrot.lane.b32.xlu0 %v899, 113
      %v1083 = vpop.permute.xlu0 %1082
      %1084 = vrot.lane.b32.xlu0 %v901, 113
      %v1085 = vpop.permute.xlu0 %1084
      %1086 = vrot.lane.b32.xlu0 %v903, 113
      %v1087 = vpop.permute.xlu0 %1086
      %v1088 = vsel %vm468, %v1073, %v1081
      %v1089 = vsel %vm468, %v1075, %v1083
      %v1090 = vsel %vm468, %v1077, %v1085
      %v1091 = vsel %vm468, %v1079, %v1087
      %v1092 = vsel %vm468, %v1081, %v1073
      %v1093 = vsel %vm468, %v1083, %v1075
      %v1094 = vsel %vm468, %v1085, %v1077
      %v1095 = vsel %vm468, %v1087, %v1079
      %v1096 = vmul.f32 %v1088, %v474
      %v1097 = vmul.f32 %v1092, %v478
      %v1098 = vmul.f32 %v1089, %v474
      %v1099 = vmul.f32 %v1093, %v478
      %v1100 = vmul.f32 %v1090, %v474
      %v1101 = vmul.f32 %v1094, %v478
      %v1102 = vmul.f32 %v1091, %v474
      %v1103 = vmul.f32 %v1095, %v478
      %1104 = vrot.lane.b32.xlu0 %v896, 112
      %v1105 = vpop.permute.xlu0 %1104
      %1106 = vrot.lane.b32.xlu0 %v898, 112
      %v1107 = vpop.permute.xlu0 %1106
      %1108 = vrot.lane.b32.xlu0 %v900, 112
      %v1109 = vpop.permute.xlu0 %1108
      %1110 = vrot.lane.b32.xlu0 %v902, 112
      %v1111 = vpop.permute.xlu0 %1110
      %1112 = vrot.lane.b32.xlu0 %v897, 112
      %v1113 = vpop.permute.xlu0 %1112
      %1114 = vrot.lane.b32.xlu0 %v899, 112
      %v1115 = vpop.permute.xlu0 %1114
      %1116 = vrot.lane.b32.xlu0 %v901, 112
      %v1117 = vpop.permute.xlu0 %1116
      %1118 = vrot.lane.b32.xlu0 %v903, 112
      %v1119 = vpop.permute.xlu0 %1118
      %v1120 = vsel %vm485, %v1105, %v1113
      %v1121 = vsel %vm485, %v1107, %v1115
      %v1122 = vsel %vm485, %v1109, %v1117
      %v1123 = vsel %vm485, %v1111, %v1119
      %v1124 = vsel %vm485, %v1113, %v1105
      %v1125 = vsel %vm485, %v1115, %v1107
      %v1126 = vsel %vm485, %v1117, %v1109
      %v1127 = vsel %vm485, %v1119, %v1111
      %v1128 = vmul.f32 %v1120, %v491
      %v1129 = vmul.f32 %v1124, %v495
      %v1130 = vmul.f32 %v1121, %v491
      %v1131 = vmul.f32 %v1125, %v495
      %v1132 = vmul.f32 %v1122, %v491
      %v1133 = vmul.f32 %v1126, %v495
      %v1134 = vmul.f32 %v1123, %v491
      %v1135 = vmul.f32 %v1127, %v495
      %1136 = vrot.lane.b32.xlu0 %v896, 111
      %v1137 = vpop.permute.xlu0 %1136
      %1138 = vrot.lane.b32.xlu0 %v898, 111
      %v1139 = vpop.permute.xlu0 %1138
      %1140 = vrot.lane.b32.xlu0 %v900, 111
      %v1141 = vpop.permute.xlu0 %1140
      %1142 = vrot.lane.b32.xlu0 %v902, 111
      %v1143 = vpop.permute.xlu0 %1142
      %1144 = vrot.lane.b32.xlu0 %v897, 111
      %v1145 = vpop.permute.xlu0 %1144
      %1146 = vrot.lane.b32.xlu0 %v899, 111
      %v1147 = vpop.permute.xlu0 %1146
      %1148 = vrot.lane.b32.xlu0 %v901, 111
      %v1149 = vpop.permute.xlu0 %1148
      %1150 = vrot.lane.b32.xlu0 %v903, 111
      %v1151 = vpop.permute.xlu0 %1150
      %v1152 = vsel %vm502, %v1137, %v1145
      %v1153 = vsel %vm502, %v1139, %v1147
      %v1154 = vsel %vm502, %v1141, %v1149
      %v1155 = vsel %vm502, %v1143, %v1151
      %v1156 = vsel %vm502, %v1145, %v1137
      %v1157 = vsel %vm502, %v1147, %v1139
      %v1158 = vsel %vm502, %v1149, %v1141
      %v1159 = vsel %vm502, %v1151, %v1143
      %v1160 = vmul.f32 %v1152, %v508
      %v1161 = vmul.f32 %v1156, %v512
      %v1162 = vmul.f32 %v1153, %v508
      %v1163 = vmul.f32 %v1157, %v512
      %v1164 = vmul.f32 %v1154, %v508
      %v1165 = vmul.f32 %v1158, %v512
      %v1166 = vmul.f32 %v1155, %v508
      %v1167 = vmul.f32 %v1159, %v512
      %v1168 = vpack.c.bf16 %v930, %v928
      %v1169 = vpack.c.bf16 %v931, %v929
      %v1170 = vpack.c.bf16 %v934, %v932
      %v1171 = vpack.c.bf16 %v935, %v933
      %v1172 = vpack.c.bf16 %v962, %v960
      %v1173 = vpack.c.bf16 %v963, %v961
      %v1174 = vpack.c.bf16 %v966, %v964
      %v1175 = vpack.c.bf16 %v967, %v965
      %v1176 = vpack.c.bf16 %v994, %v992
      %v1177 = vpack.c.bf16 %v995, %v993
      %v1178 = vpack.c.bf16 %v998, %v996
      %v1179 = vpack.c.bf16 %v999, %v997
      %v1180 = vpack.c.bf16 %v1026, %v1024
      %v1181 = vpack.c.bf16 %v1027, %v1025
      %v1182 = vpack.c.bf16 %v1030, %v1028
      %v1183 = vpack.c.bf16 %v1031, %v1029
      %v1184 = vpack.c.bf16 %v1034, %v1032
      %v1185 = vpack.c.bf16 %v1035, %v1033
      %v1186 = vpack.c.bf16 %v1038, %v1036
      %v1187 = vpack.c.bf16 %v1039, %v1037
      %v1188 = vpack.c.bf16 %v1066, %v1064
      %v1189 = vpack.c.bf16 %v1067, %v1065
      %v1190 = vpack.c.bf16 %v1070, %v1068
      %v1191 = vpack.c.bf16 %v1071, %v1069
      %v1192 = vpack.c.bf16 %v1098, %v1096
      %v1193 = vpack.c.bf16 %v1099, %v1097
      %v1194 = vpack.c.bf16 %v1102, %v1100
      %v1195 = vpack.c.bf16 %v1103, %v1101
      %v1196 = vpack.c.bf16 %v1130, %v1128
      %v1197 = vpack.c.bf16 %v1131, %v1129
      %v1198 = vpack.c.bf16 %v1134, %v1132
      %v1199 = vpack.c.bf16 %v1135, %v1133
      %v1200 = vpack.c.bf16 %v1162, %v1160
      %v1201 = vpack.c.bf16 %v1163, %v1161
      %v1202 = vpack.c.bf16 %v1166, %v1164
      %v1203 = vpack.c.bf16 %v1167, %v1165
      %v1204 = vld [vmem:[%s7] sm:$0xff]
      %v1205 = vld [vmem:[%s7 + $0x8] sm:$0xf]
      %v1206 = vld [vmem:[%s7 + $0xc] sm:$0xff]
      %v1207 = vld [vmem:[%s7 + $0x14] sm:$0xf]
      %v1208 = vld [vmem:[%s7 + $0x18] sm:$0xff]
      %v1209 = vld [vmem:[%s7 + $0x20] sm:$0xf]
      %v1210 = vld [vmem:[%s7 + $0x24] sm:$0xff]
      %v1211 = vld [vmem:[%s7 + $0x2c] sm:$0xf]
      %v1212 = vld [vmem:[%s7 + $0x30] sm:$0xff]
      %v1213 = vld [vmem:[%s7 + $0x38] sm:$0xf]
      %v1214 = vld [vmem:[%s7 + $0x3c] sm:$0xff]
      %v1215 = vld [vmem:[%s7 + $0x44] sm:$0xf]
      %v1216 = vld [vmem:[%s7 + $0x48] sm:$0xff]
      %v1217 = vld [vmem:[%s7 + $0x50] sm:$0xf]
      %v1218 = vld [vmem:[%s7 + $0x54] sm:$0xff]
      %v1219 = vld [vmem:[%s7 + $0x5c] sm:$0xf]
      %v1236 = vunpack.c.l.b16 %v1204
      %v1237 = vunpack.c.h.b16 %v1204
      %v1238 = vunpack.c.l.b16 %v1205
      %v1239 = vunpack.c.l.b16 %v1206
      %v1240 = vunpack.c.h.b16 %v1206
      %v1241 = vunpack.c.l.b16 %v1207
      %v1242 = vunpack.c.l.b16 %v1208
      %v1243 = vunpack.c.h.b16 %v1208
      %v1244 = vunpack.c.l.b16 %v1209
      %v1245 = vunpack.c.l.b16 %v1210
      %v1246 = vunpack.c.h.b16 %v1210
      %v1247 = vunpack.c.l.b16 %v1211
      %v1248 = vunpack.c.l.b16 %v1212
      %v1249 = vunpack.c.h.b16 %v1212
      %v1250 = vunpack.c.l.b16 %v1213
      %v1251 = vunpack.c.l.b16 %v1214
      %v1252 = vunpack.c.h.b16 %v1214
      %v1253 = vunpack.c.l.b16 %v1215
      %v1254 = vunpack.c.l.b16 %v1216
      %v1255 = vunpack.c.h.b16 %v1216
      %v1256 = vunpack.c.l.b16 %v1217
      %v1257 = vunpack.c.l.b16 %v1218
      %v1258 = vunpack.c.h.b16 %v1218
      %v1259 = vunpack.c.l.b16 %v1219
      %v1260 = vpack.c.b16 %v1239, %v1236
      %v1261 = vpack.c.b16 %v1240, %v1237
      %v1262 = vpack.c.b16 %v1241, %v1238
      %v1263 = vpack.c.b16 %v1245, %v1242
      %v1264 = vpack.c.b16 %v1246, %v1243
      %v1265 = vpack.c.b16 %v1247, %v1244
      %v1266 = vpack.c.b16 %v1251, %v1248
      %v1267 = vpack.c.b16 %v1252, %v1249
      %v1268 = vpack.c.b16 %v1253, %v1250
      %v1269 = vpack.c.b16 %v1257, %v1254
      %v1270 = vpack.c.b16 %v1258, %v1255
      %v1271 = vpack.c.b16 %v1259, %v1256
      %vm1280 = vcmask 261120
      %v1282 = vsel %vm1280, %v1262, 0
      %v1285 = vsel %vm1280, %v1265, 0
      %v1288 = vsel %vm1280, %v1268, 0
      %v1291 = vsel %vm1280, %v1271, 0
      %1293 = vmatprep.subr.bf16.mxu0 %v1169
      %1294 = vmatpush1.bf16.msra.mxu0 %v1168
      %1295 = vmatprep.subr.bf16.mxu0 %v1171
      %1296 = vmatpush1.bf16.msra.mxu0 %v1170
      %1297 = vmatprep.subr.bf16.mxu0 %v1173
      %1298 = vmatpush1.bf16.msra.mxu0 %v1172
      %1299 = vmatprep.subr.bf16.mxu0 %v1175
      %1300 = vmatpush1.bf16.msra.mxu0 %v1174
      %1301 = vmatprep.subr.bf16.mxu0 %v1177
      %1302 = vmatpush1.bf16.msra.mxu0 %v1176
      %1303 = vmatprep.subr.bf16.mxu0 %v1179
      %1304 = vmatpush1.bf16.msra.mxu0 %v1178
      %1305 = vmatprep.subr.bf16.mxu0 %v1181
      %1306 = vmatpush1.bf16.msra.mxu0 %v1180
      %1307 = vmatprep.subr.bf16.mxu0 %v1183
      %1308 = vmatpush1.bf16.msra.mxu0 %v1182
      %1309 = vmatprep.subr.bf16.mxu0 %v1185
      %1310 = vmatpush1.bf16.msra.mxu0 %v1184
      %1311 = vmatprep.subr.bf16.mxu0 %v1187
      %1312 = vmatpush1.bf16.msra.mxu0 %v1186
      %1313 = vmatprep.subr.bf16.mxu0 %v1189
      %1314 = vmatpush1.bf16.msra.mxu0 %v1188
      %1315 = vmatprep.subr.bf16.mxu0 %v1191
      %1316 = vmatpush1.bf16.msra.mxu0 %v1190
      %1317 = vmatprep.subr.bf16.mxu0 %v1193
      %1318 = vmatpush1.bf16.msra.mxu0 %v1192
      %1319 = vmatprep.subr.bf16.mxu0 %v1195
      %1320 = vmatpush1.bf16.msra.mxu0 %v1194
      %1321 = vmatprep.subr.bf16.mxu0 %v1197
      %1322 = vmatpush1.bf16.msra.mxu0 %v1196
      %1323 = vmatprep.subr.bf16.mxu0 %v1199
      %1324 = vmatpush1.bf16.msra.mxu0 %v1198
      %1325 = vmatprep.mubr.bf16.mxu0 %v1261
      %1326 = vmatmul.mubr.bf16.gmra.mrb[0].mxu0 %v1260
      %v1327 = vpop.f32.mrb[0].mxu0
      %v1328 = vadd.f32 0.0, %v1327
      %v1329 = vpop.f32.mrb[0].mxu0
      %v1330 = vadd.f32 0.0, %v1329
      %v1331 = vpop.f32.mrb[0].mxu0
      %v1332 = vadd.f32 0.0, %v1331
      %v1333 = vpop.f32.mrb[0].mxu0
      %v1334 = vadd.f32 0.0, %v1333
      %1335 = vmatprep.mubr.bf16.mxu0 %v1264
      %1336 = vmatmul.mubr.bf16.gmra.mrb[0].mxu0 %v1263
      %v1337 = vpop.f32.mrb[0].mxu0
      %v1338 = vadd.f32 0.0, %v1337
      %v1339 = vpop.f32.mrb[0].mxu0
      %v1340 = vadd.f32 0.0, %v1339
      %v1341 = vpop.f32.mrb[0].mxu0
      %v1342 = vadd.f32 0.0, %v1341
      %v1343 = vpop.f32.mrb[0].mxu0
      %v1344 = vadd.f32 0.0, %v1343
      %1345 = vmatprep.mubr.bf16.mxu0 %v1267
      %1346 = vmatmul.mubr.bf16.gmra.mrb[0].mxu0 %v1266
      %v1347 = vpop.f32.mrb[0].mxu0
      %v1348 = vadd.f32 0.0, %v1347
      %v1349 = vpop.f32.mrb[0].mxu0
      %v1350 = vadd.f32 0.0, %v1349
      %v1351 = vpop.f32.mrb[0].mxu0
      %v1352 = vadd.f32 0.0, %v1351
      %v1353 = vpop.f32.mrb[0].mxu0
      %v1354 = vadd.f32 0.0, %v1353
      %1355 = vmatprep.mubr.bf16.mxu0 %v1270
      %1356 = vmatmul.mubr.bf16.gmra.mrb[0].mxu0 %v1269
      %v1357 = vpop.f32.mrb[0].mxu0
      %v1358 = vadd.f32 0.0, %v1357
      %v1359 = vpop.f32.mrb[0].mxu0
      %v1360 = vadd.f32 0.0, %v1359
      %v1361 = vpop.f32.mrb[0].mxu0
      %v1362 = vadd.f32 0.0, %v1361
      %v1363 = vpop.f32.mrb[0].mxu0
      %v1364 = vadd.f32 0.0, %v1363
      %1365 = vdwg.mxu0
      %1366 = vmatprep.subr.bf16.mxu0 %v1201
      %1367 = vmatpush1.bf16.msra.mxu0 %v1200
      %1368 = vmatprep.subr.bf16.mxu0 %v1203
      %1369 = vmatpush1.bf16.msra.mxu0 %v1202
      %1370 = vmatprep.subr.bf16.mxu0 0
      %1371 = vmatpush1.bf16.msra.mxu0 0
      %1372 = vmatprep.subr.bf16.mxu0 0
      %1373 = vmatpush1.bf16.msra.mxu0 0
      %1374 = vmatprep.subr.bf16.mxu0 0
      %1375 = vmatpush1.bf16.msra.mxu0 0
      %1376 = vmatprep.subr.bf16.mxu0 0
      %1377 = vmatpush1.bf16.msra.mxu0 0
      %1378 = vmatprep.subr.bf16.mxu0 0
      %1379 = vmatpush1.bf16.msra.mxu0 0
      %1380 = vmatprep.subr.bf16.mxu0 0
      %1381 = vmatpush1.bf16.msra.mxu0 0
      %1382 = vmatprep.subr.bf16.mxu0 0
      %1383 = vmatpush1.bf16.msra.mxu0 0
      %1384 = vmatprep.subr.bf16.mxu0 0
      %1385 = vmatpush1.bf16.msra.mxu0 0
      %1386 = vmatprep.subr.bf16.mxu0 0
      %1387 = vmatpush1.bf16.msra.mxu0 0
      %1388 = vmatprep.subr.bf16.mxu0 0
      %1389 = vmatpush1.bf16.msra.mxu0 0
      %1390 = vmatprep.subr.bf16.mxu0 0
      %1391 = vmatpush1.bf16.msra.mxu0 0
      %1392 = vmatprep.subr.bf16.mxu0 0
      %1393 = vmatpush1.bf16.msra.mxu0 0
      %1394 = vmatprep.subr.bf16.mxu0 0
      %1395 = vmatpush1.bf16.msra.mxu0 0
      %1396 = vmatprep.subr.bf16.mxu0 0
      %1397 = vmatpush1.bf16.msra.mxu0 0
      %1398 = vmatprep.mubr.bf16.mxu0 0
      %1399 = vmatmul.mubr.bf16.gmra.mrb[0].mxu0 %v1282
      %v1400 = vpop.f32.mrb[0].mxu0
      %v1401 = vadd.f32 %v1328, %v1400
      %v1402 = vpop.f32.mrb[0].mxu0
      %v1403 = vadd.f32 %v1330, %v1402
      %v1404 = vpop.f32.mrb[0].mxu0
      %v1405 = vadd.f32 %v1332, %v1404
      %v1406 = vpop.f32.mrb[0].mxu0
      %v1407 = vadd.f32 %v1334, %v1406
      %1408 = vmatprep.mubr.bf16.mxu0 0
      %1409 = vmatmul.mubr.bf16.gmra.mrb[0].mxu0 %v1285
      %v1410 = vpop.f32.mrb[0].mxu0
      %v1411 = vadd.f32 %v1338, %v1410
      %v1412 = vpop.f32.mrb[0].mxu0
      %v1413 = vadd.f32 %v1340, %v1412
      %v1414 = vpop.f32.mrb[0].mxu0
      %v1415 = vadd.f32 %v1342, %v1414
      %v1416 = vpop.f32.mrb[0].mxu0
      %v1417 = vadd.f32 %v1344, %v1416
      %1418 = vmatprep.mubr.bf16.mxu0 0
      %1419 = vmatmul.mubr.bf16.gmra.mrb[0].mxu0 %v1288
      %v1420 = vpop.f32.mrb[0].mxu0
      %v1421 = vadd.f32 %v1348, %v1420
      %v1422 = vpop.f32.mrb[0].mxu0
      %v1423 = vadd.f32 %v1350, %v1422
      %v1424 = vpop.f32.mrb[0].mxu0
      %v1425 = vadd.f32 %v1352, %v1424
      %v1426 = vpop.f32.mrb[0].mxu0
      %v1427 = vadd.f32 %v1354, %v1426
      %1428 = vmatprep.mubr.bf16.mxu0 0
      %1429 = vmatmul.mubr.bf16.gmra.mrb[0].mxu0 %v1291
      %v1430 = vpop.f32.mrb[0].mxu0
      %v1431 = vadd.f32 %v1358, %v1430
      %v1432 = vpop.f32.mrb[0].mxu0
      %v1433 = vadd.f32 %v1360, %v1432
      %v1434 = vpop.f32.mrb[0].mxu0
      %v1435 = vadd.f32 %v1362, %v1434
      %v1436 = vpop.f32.mrb[0].mxu0
      %v1437 = vadd.f32 %v1364, %v1436
      %1438 = vdwg.mxu0
      %v1439 = vld [vmem:[%s8] sm:$0xff]
      %v1440 = vld [vmem:[%s8 + $0x8] sm:$0xff]
      %v1441 = vld [vmem:[%s8 + $0x10] sm:$0xff]
      %v1442 = vld [vmem:[%s8 + $0x18] sm:$0xff]
      %v1443 = vld [vmem:[%s8 + $0x20] sm:$0xff]
      %v1444 = vld [vmem:[%s8 + $0x28] sm:$0xff]
      %v1445 = vld [vmem:[%s8 + $0x30] sm:$0xff]
      %v1446 = vld [vmem:[%s8 + $0x38] sm:$0xff]
      %1448 = vset.pattern.permute.xlu0 0
      %1449 = vperm.xlu0 %1448, %v1439
      %v1450 = vpop.permute.xlu0 %1449
      %1453 = vset.pattern.permute.xlu0 0
      %1454 = vperm.xlu0 %1453, %v1440
      %v1455 = vpop.permute.xlu0 %1454
      %1458 = vset.pattern.permute.xlu0 0
      %1459 = vperm.xlu0 %1458, %v1441
      %v1460 = vpop.permute.xlu0 %1459
      %1463 = vset.pattern.permute.xlu0 0
      %1464 = vperm.xlu0 %1463, %v1442
      %v1465 = vpop.permute.xlu0 %1464
      %1468 = vset.pattern.permute.xlu0 0
      %1469 = vperm.xlu0 %1468, %v1443
      %v1470 = vpop.permute.xlu0 %1469
      %1473 = vset.pattern.permute.xlu0 0
      %1474 = vperm.xlu0 %1473, %v1444
      %v1475 = vpop.permute.xlu0 %1474
      %1478 = vset.pattern.permute.xlu0 0
      %1479 = vperm.xlu0 %1478, %v1445
      %v1480 = vpop.permute.xlu0 %1479
      %1483 = vset.pattern.permute.xlu0 0
      %1484 = vperm.xlu0 %1483, %v1446
      %v1485 = vpop.permute.xlu0 %1484
      %v1487 = vmul.f32 %v1401, %v1450
      %v1488 = vmul.f32 %v1403, %v1450
      %v1489 = vmul.f32 %v1405, %v1455
      %v1490 = vmul.f32 %v1407, %v1455
      %v1491 = vmul.f32 %v1411, %v1460
      %v1492 = vmul.f32 %v1413, %v1460
      %v1493 = vmul.f32 %v1415, %v1465
      %v1494 = vmul.f32 %v1417, %v1465
      %v1495 = vmul.f32 %v1421, %v1470
      %v1496 = vmul.f32 %v1423, %v1470
      %v1497 = vmul.f32 %v1425, %v1475
      %v1498 = vmul.f32 %v1427, %v1475
      %v1499 = vmul.f32 %v1431, %v1480
      %v1500 = vmul.f32 %v1433, %v1480
      %v1501 = vmul.f32 %v1435, %v1485
      %v1502 = vmul.f32 %v1437, %v1485
      %v1503 = vld [vmem:[%s9] sm:$0xff]
      %v1504 = vld [vmem:[%s9 + $0x8] sm:$0xff]
      %v1505 = vld [vmem:[%s9 + $0x10] sm:$0xff]
      %v1506 = vld [vmem:[%s9 + $0x18] sm:$0xff]
      %v1507 = vld [vmem:[%s9 + $0x20] sm:$0xff]
      %v1508 = vld [vmem:[%s9 + $0x28] sm:$0xff]
      %v1509 = vld [vmem:[%s9 + $0x30] sm:$0xff]
      %v1510 = vld [vmem:[%s9 + $0x38] sm:$0xff]
      %1512 = vset.pattern.permute.xlu0 0
      %1513 = vperm.xlu0 %1512, %v1503
      %v1514 = vpop.permute.xlu0 %1513
      %1517 = vset.pattern.permute.xlu0 0
      %1518 = vperm.xlu0 %1517, %v1504
      %v1519 = vpop.permute.xlu0 %1518
      %1522 = vset.pattern.permute.xlu0 0
      %1523 = vperm.xlu0 %1522, %v1505
      %v1524 = vpop.permute.xlu0 %1523
      %1527 = vset.pattern.permute.xlu0 0
      %1528 = vperm.xlu0 %1527, %v1506
      %v1529 = vpop.permute.xlu0 %1528
      %1532 = vset.pattern.permute.xlu0 0
      %1533 = vperm.xlu0 %1532, %v1507
      %v1534 = vpop.permute.xlu0 %1533
      %1537 = vset.pattern.permute.xlu0 0
      %1538 = vperm.xlu0 %1537, %v1508
      %v1539 = vpop.permute.xlu0 %1538
      %1542 = vset.pattern.permute.xlu0 0
      %1543 = vperm.xlu0 %1542, %v1509
      %v1544 = vpop.permute.xlu0 %1543
      %1547 = vset.pattern.permute.xlu0 0
      %1548 = vperm.xlu0 %1547, %v1510
      %v1549 = vpop.permute.xlu0 %1548
      %v1551 = vadd.f32 %v1487, %v1514
      %v1552 = vadd.f32 %v1488, %v1514
      %v1553 = vadd.f32 %v1489, %v1519
      %v1554 = vadd.f32 %v1490, %v1519
      %v1555 = vadd.f32 %v1491, %v1524
      %v1556 = vadd.f32 %v1492, %v1524
      %v1557 = vadd.f32 %v1493, %v1529
      %v1558 = vadd.f32 %v1494, %v1529
      %v1559 = vadd.f32 %v1495, %v1534
      %v1560 = vadd.f32 %v1496, %v1534
      %v1561 = vadd.f32 %v1497, %v1539
      %v1562 = vadd.f32 %v1498, %v1539
      %v1563 = vadd.f32 %v1499, %v1544
      %v1564 = vadd.f32 %v1500, %v1544
      %v1565 = vadd.f32 %v1501, %v1549
      %v1566 = vadd.f32 %v1502, %v1549
      %v1567 = vmax.f32 %v1551, 0.0
      %v1568 = vmax.f32 %v1552, 0.0
      %v1569 = vmax.f32 %v1553, 0.0
      %v1570 = vmax.f32 %v1554, 0.0
      %v1571 = vmax.f32 %v1555, 0.0
      %v1572 = vmax.f32 %v1556, 0.0
      %v1573 = vmax.f32 %v1557, 0.0
      %v1574 = vmax.f32 %v1558, 0.0
      %v1575 = vmax.f32 %v1559, 0.0
      %v1576 = vmax.f32 %v1560, 0.0
      %v1577 = vmax.f32 %v1561, 0.0
      %v1578 = vmax.f32 %v1562, 0.0
      %v1579 = vmax.f32 %v1563, 0.0
      %v1580 = vmax.f32 %v1564, 0.0
      %v1581 = vmax.f32 %v1565, 0.0
      %v1582 = vmax.f32 %v1566, 0.0
      %v1583 = vadd.f32 %v1567, %v1568
      %1584 = vadd.xlane.f32.xlu0 %v1583
      %v1585 = vpop.xlane.xlu0 %1584
      %v1586 = vadd.f32 %v1569, %v1570
      %1587 = vadd.xlane.f32.xlu0 %v1586
      %v1588 = vpop.xlane.xlu0 %1587
      %v1589 = vadd.f32 %v1571, %v1572
      %1590 = vadd.xlane.f32.xlu0 %v1589
      %v1591 = vpop.xlane.xlu0 %1590
      %v1592 = vadd.f32 %v1573, %v1574
      %1593 = vadd.xlane.f32.xlu0 %v1592
      %v1594 = vpop.xlane.xlu0 %1593
      %v1595 = vadd.f32 %v1575, %v1576
      %1596 = vadd.xlane.f32.xlu0 %v1595
      %v1597 = vpop.xlane.xlu0 %1596
      %v1598 = vadd.f32 %v1577, %v1578
      %1599 = vadd.xlane.f32.xlu0 %v1598
      %v1600 = vpop.xlane.xlu0 %1599
      %v1601 = vadd.f32 %v1579, %v1580
      %1602 = vadd.xlane.f32.xlu0 %v1601
      %v1603 = vpop.xlane.xlu0 %1602
      %v1604 = vadd.f32 %v1581, %v1582
      %1605 = vadd.xlane.f32.xlu0 %v1604
      %v1606 = vpop.xlane.xlu0 %1605
      %v1607 = vmul.f32 %v1585, 0.00390625
      %v1608 = vmul.f32 %v1588, 0.00390625
      %v1609 = vmul.f32 %v1591, 0.00390625
      %v1610 = vmul.f32 %v1594, 0.00390625
      %v1611 = vmul.f32 %v1597, 0.00390625
      %v1612 = vmul.f32 %v1600, 0.00390625
      %v1613 = vmul.f32 %v1603, 0.00390625
      %v1614 = vmul.f32 %v1606, 0.00390625
      %vm1615 = vcmask 7168
      %1616 = vst.msk [vmem:[%s359] sm:$0xff] %vm1615, %v1607
      %1617 = vst.msk [vmem:[%s359 + $0x8] sm:$0xff] %vm1615, %v1608
      %1618 = vst.msk [vmem:[%s359 + $0x10] sm:$0xff] %vm1615, %v1609
      %1619 = vst.msk [vmem:[%s359 + $0x18] sm:$0xff] %vm1615, %v1610
      %1620 = vst.msk [vmem:[%s359 + $0x20] sm:$0xff] %vm1615, %v1611
      %1621 = vst.msk [vmem:[%s359 + $0x28] sm:$0xff] %vm1615, %v1612
      %1622 = vst.msk [vmem:[%s359 + $0x30] sm:$0xff] %vm1615, %v1613
      %1623 = vst.msk [vmem:[%s359 + $0x38] sm:$0xff] %vm1615, %v1614
      %p1624 = scmp.lt.s32.totalorder %s21, 1
      %s1625 = scalar_select %p1624, %s21, 1
      %s1626 = smul.addr %s1625, 8
      %s1627 = smul.addr %s1626, 8
      %s1628 = scalar_lea.vmem %s10, %s1627
      // Predicated region
      $region61: #{combined_flow_forward.1} parent=59 // pred_check
        %p1629 = pneg %p254
      $region62: #{combined_flow_forward.1} parent=59 // pred_check_branch
        %1631 = sbr.rel (%p1629) target = $region64
      $region63: #{combined_flow_forward.1} parent=59 // pred_region
        _
      $region64: #{combined_flow_forward.1} parent=59 // pred_fallthru
        _
    $region60: #{combined_flow_forward.1} parent=5 // pred_fallthru
      _
    %p1632 = scmp.le.s32.totalorder 2, %s16
    // Predicated region
    $region65: #{combined_flow_forward.1} parent=5 // pred_check
      %p1633 = pneg %p1632
    $region66: #{combined_flow_forward.1} parent=5 // pred_check_branch
      %1635 = sbr.rel (%p1633) target = $region68
    $region67: #{combined_flow_forward.1} parent=5 // pred_region
      %s1636 = ssub.s32 %s16, 2
      // Predicated region
      $region69: #{combined_flow_forward.1} parent=67 // pred_check
        %p1637 = pneg %p260
      $region70: #{combined_flow_forward.1} parent=67 // pred_check_branch
        %1639 = sbr.rel (%p1637) target = $region72
      $region71: #{combined_flow_forward.1} parent=67 // pred_region
        %p1640 = scmp.lt.s32.totalorder %s22, 1
        %s1641 = scalar_select %p1640, %s22, 1
        %s1642 = smul.addr %s1641, 8
        %s1643 = smul.addr %s1642, 8
        %s1644 = scalar_lea.vmem %s10, %s1643
      $region72: #{combined_flow_forward.1} parent=67 // pred_fallthru
        _
    $region68: #{combined_flow_forward.1} parent=5 // pred_fallthru
      _
  $region6: #{combined_flow_forward.1} parent=0 // loop_footer
    %s20 = sadd.s32 1, %s16
  $region7: #{combined_flow_forward.1} parent=0 // loop_footer_branch
    %15 = sbr.rel target = $region3
  $region8: #{combined_flow_forward.1} parent=0 // loop_exit
    _

</llo_original>
